<compile_context>
chip_gen: v5e
topology: v5e:2x2
jax: 0.10.0
libtpu: 0.0.40
codegen_flags: <defaults>
</compile_context>

<pallas_src>
import jax
import jax.numpy as jnp
from jax import lax
from jax.experimental import pallas as pl
from jax.experimental.pallas import tpu as pltpu


LANES = 128    # lane (minor) axis width
SUB = 8        # f32 sublane strip height (one vreg)
ROW_CAP = 256  # max rows per block -> ~9.4 MB double-buffered (5 in + 4 out streams)


# ----------------------------- kernel helpers ------------------------------ #
def _fuse(w, b, tiles):
    """out[co] = b[co] + sum_k w[k][co] * tiles[k]  as wide VPU FMAs.

    w: list[K][C] of f32 scalars (hoisted SMEM reads), b: list[C] of scalars,
    tiles: list[K] of (strip, LANES) f32 arrays.  Returns list[C] of tiles.
    """
    K = len(tiles)
    C = len(b)
    outs = []
    for co in range(C):
        acc = tiles[0] * w[0][co]
        for k in range(1, K):
            acc = acc + tiles[k] * w[k][co]
        outs.append(acc + b[co])
    return outs


def _strip_plan(rows):
    """Strip height for the in-block row loop (one f32 vreg when possible)."""
    if rows > SUB and rows % SUB == 0:
        return SUB, rows // SUB
    return rows, 1          # tiny / full-extent block: single strip


def _stack_fused_kernel(w_ref, b_ref, x_ref, r1_ref, r2_ref, r3_ref, f_ref):
    # x_ref: (1, 5, C, rows, LANES) VMEM block; w_ref: (3C, C) SMEM; b_ref: (C,) SMEM.
    _, T, C, rows, _ = x_ref.shape
    out_refs = (r1_ref, r2_ref, r3_ref)
    # Hoist the loop-invariant SMEM scalar reads out of the strip loop.
    w = [[w_ref[k, co] for co in range(C)] for k in range(3 * C)]
    b = [b_ref[co] for co in range(C)]
    strip, n_strips = _strip_plan(rows)

    def do_strip(r0):
        sl = pl.ds(r0, strip)
        # 5 frames x C channels, each a full-occupancy (strip, LANES) tile.
        frames = [[x_ref[0, t, ci, sl, :].astype(jnp.float32) for ci in range(C)]
                  for t in range(T)]
        recs = []
        for wdx in range(3):                       # sliding windows 0..2, 1..3, 2..4
            win = frames[wdx] + frames[wdx + 1] + frames[wdx + 2]
            outs = _fuse(w, b, win)
            recs.append(outs)
            oref = out_refs[wdx]
            for co in range(C):
                oref[0, co, sl, :] = outs[co].astype(oref.dtype)
        # Final stage consumes the three reconstructions without an HBM trip.
        fin = _fuse(w, b, recs[0] + recs[1] + recs[2])
        for co in range(C):
            f_ref[0, co, sl, :] = fin[co].astype(f_ref.dtype)

    if n_strips == 1:
        do_strip(0)
    else:
        def body(s, carry):
            do_strip(pl.multiple_of(s * strip, strip))
            return carry
        lax.fori_loop(0, n_strips, body, 0)


def _recons_kernel(w_ref, b_ref, x_ref, o_ref):
    # Single-stage path (use_stack=False): x_ref is (1, 3, C, rows, LANES).
    _, T, C, rows, _ = x_ref.shape
    w = [[w_ref[k, co] for co in range(C)] for k in range(T * C)]
    b = [b_ref[co] for co in range(C)]
    strip, n_strips = _strip_plan(rows)

    def do_strip(r0):
        sl = pl.ds(r0, strip)
        tiles = [x_ref[0, t, ci, sl, :].astype(jnp.float32)
                 for t in range(T) for ci in range(C)]
        outs = _fuse(w, b, tiles)
        for co in range(C):
            o_ref[0, co, sl, :] = outs[co].astype(o_ref.dtype)

    if n_strips == 1:
        do_strip(0)
    else:
        def body(s, carry):
            do_strip(pl.multiple_of(s * strip, strip))
            return carry
        lax.fori_loop(0, n_strips, body, 0)


# ------------------------------ layout helpers ------------------------------ #
def _to_tiles(x_flat, S):
    """(B, T, C, S) -> (B, T, C, R, LANES); pads S up to a multiple of LANES."""
    s_pad = pl.cdiv(S, LANES) * LANES
    if s_pad != S:
        x_flat = jnp.pad(x_flat, ((0, 0), (0, 0), (0, 0), (0, s_pad - S)))
    B, T, C = x_flat.shape[:3]
    return x_flat.reshape(B, T, C, s_pad // LANES, LANES)


def _row_tile(R, batch):
    """Rows per block: multiple of SUB (full sublane occupancy), VMEM-capped."""
    if R <= SUB:
        return R                                   # full-extent block (tiny images)
    rt = min(ROW_CAP, (R // SUB) * SUB)
    nblk = pl.cdiv(R, rt)
    if batch * nblk < 2 and rt >= 2 * SUB:         # keep >=2 grid steps for v7x megacore
        rt = pl.cdiv(rt // 2, SUB) * SUB
    return rt


_SMEM_SPEC = pl.BlockSpec(memory_space=pltpu.MemorySpace.SMEM)


# ------------------------------ pallas wrappers ----------------------------- #
def _stack_fused_apply(x, params):
    """x: (B, 5, C, H, W) -> dict of four (B, C, H, W) reconstructions."""
    B, T, C, H, W = x.shape
    assert T == 5
    S = H * W
    x5 = _to_tiles(x.reshape(B, T, C, S), S)       # (B, T, C, R, LANES); free when S%128==0
    R = x5.shape[3]
    rt = _row_tile(R, B)
    grid = (B, pl.cdiv(R, rt))

    in_spec = pl.BlockSpec((1, T, C, rt, LANES), lambda bi, ri: (bi, 0, 0, ri, 0))
    out_spec = pl.BlockSpec((1, C, rt, LANES), lambda bi, ri: (bi, 0, ri, 0))
    out_sds = jax.ShapeDtypeStruct((B, C, R, LANES), x.dtype)

    itemsize = jnp.dtype(x.dtype).itemsize
    cost = pl.CostEstimate(
        flops=int(4 * 2 * (3 * C) * C * B * S),            # 4 stages of (S x 3C)@(3C x C)
        transcendentals=0,
        bytes_accessed=int(B * S * C * itemsize * (5 + 4)),  # read 5 frames, write 4 outs
    )

    r1, r2, r3, fin = pl.pallas_call(
        _stack_fused_kernel,
        out_shape=(out_sds,) * 4,
        grid_spec=pltpu.PrefetchScalarGridSpec(
            num_scalar_prefetch=0,
            grid=grid,
            in_specs=[_SMEM_SPEC, _SMEM_SPEC, in_spec],
            out_specs=(out_spec,) * 4,
        ),
        compiler_params=pltpu.CompilerParams(
            dimension_semantics=("parallel", "parallel")),
        cost_estimate=cost,
    )(params["w"], params["b"], x5)

    def unflat(y):
        return y.reshape(B, C, R * LANES)[:, :, :S].reshape(B, C, H, W)

    return {"out": {"recons_1": unflat(r1), "recons_2": unflat(r2),
                    "recons_3": unflat(r3), "final": unflat(fin)}}


def recons_net_apply(stacked, params):
    """Synthetic recons_net: (B, 3, C, H, W) -> {'out': (B, C, H, W)}."""
    B, T, C, H, W = stacked.shape
    assert T == 3
    S = H * W
    x3 = _to_tiles(stacked.reshape(B, T, C, S), S)
    R = x3.shape[3]
    rt = _row_tile(R, B)
    grid = (B, pl.cdiv(R, rt))

    in_spec = pl.BlockSpec((1, T, C, rt, LANES), lambda bi, ri: (bi, 0, 0, ri, 0))
    out_spec = pl.BlockSpec((1, C, rt, LANES), lambda bi, ri: (bi, 0, ri, 0))

    itemsize = jnp.dtype(stacked.dtype).itemsize
    cost = pl.CostEstimate(
        flops=int(2 * (3 * C) * C * B * S),
        transcendentals=0,
        bytes_accessed=int(B * S * C * itemsize * (3 + 1)),
    )

    out = pl.pallas_call(
        _recons_kernel,
        out_shape=jax.ShapeDtypeStruct((B, C, R, LANES), stacked.dtype),
        grid_spec=pltpu.PrefetchScalarGridSpec(
            num_scalar_prefetch=0,
            grid=grid,
            in_specs=[_SMEM_SPEC, _SMEM_SPEC, in_spec],
            out_specs=out_spec,
        ),
        compiler_params=pltpu.CompilerParams(
            dimension_semantics=("parallel", "parallel")),
        cost_estimate=cost,
    )(params["w"], params["b"], x3)

    out = out.reshape(B, C, R * LANES)[:, :, :S].reshape(B, C, H, W)
    return {"out": out}


# ------------------------------ Stack.forward ------------------------------ #
def stack_forward(x, params, *, n_sequence=5, use_stack=True):
    """Forward pass of models/Stack.py.  x: (B, n_sequence, C, H, W)."""
    # TODO(synk): down_size (bilinear F.interpolate) is defined but never
    # called in the original forward(); not implemented here.
    if use_stack:
        assert n_sequence == 5, "Please set DATA.INPUT_LENGTH to 5."
        return _stack_fused_apply(x, params)
    else:
        assert n_sequence == 3, "Please set DATA.INPUT_LENGTH to 3."
        return recons_net_apply(x, params)


# --------------------------- pure-JAX reference ----------------------------- #
def _recons_ref(stacked, params):
    B, T, C, H, W = stacked.shape
    w3 = params["w"].reshape(T, C, C)                      # [t, ci, co]
    out = jnp.einsum("btihw,tio->bohw", stacked, w3) + params["b"][None, :, None, None]
    return {"out": out}


def _stack_forward_ref(x, params):
    frames = [x[:, i] for i in range(5)]
    r1 = _recons_ref(jnp.stack(frames[0:3], axis=1), params)
    r2 = _recons_ref(jnp.stack(frames[1:4], axis=1), params)
    r3 = _recons_ref(jnp.stack(frames[2:5], axis=1), params)
    fin = _recons_ref(jnp.stack([r1["out"], r2["out"], r3["out"]], axis=1), params)
    return {"out": {"recons_1": r1["out"], "recons_2": r2["out"],
                    "recons_3": r3["out"], "final": fin["out"]}}


# ---------------------------------- main ----------------------------------- #
if __name__ == "__main__":
    B, T, C, H, W = 2, 5, 4, 16, 16
    key = jax.random.PRNGKey(0)
    kx, kw, kb = jax.random.split(key, 3)

    x = jax.random.normal(kx, (B, T, C, H, W), dtype=jnp.float32)
    params = {
        "w": jax.random.normal(kw, (3 * C, C), dtype=jnp.float32) * 0.1,
        "b": jax.random.normal(kb, (C,), dtype=jnp.float32) * 0.01,
    }

    # use_stack=True path (the main Stack.forward branch).
    fwd = jax.jit(lambda xx, pp: stack_forward(xx, pp, n_sequence=5, use_stack=True))
    out = fwd(x, params)
    jax.block_until_ready(out)

    ref = _stack_forward_ref(x, params)
    for name in ("recons_1", "recons_2", "recons_3", "final"):
        got = out["out"][name]
        want = ref["out"][name]
        assert got.shape == (B, C, H, W), (name, got.shape)
        assert jnp.allclose(got, want, atol=1e-4, rtol=1e-4), name

    # use_stack=False path (n_sequence == 3).
    x3 = x[:, :3]
    fwd3 = jax.jit(lambda xx, pp: stack_forward(xx, pp, n_sequence=3, use_stack=False))
    out3 = fwd3(x3, params)
    jax.block_until_ready(out3)
    want3 = _recons_ref(x3, params)["out"]
    assert out3["out"].shape == (B, C, H, W)
    assert jnp.allclose(out3["out"], want3, atol=1e-4, rtol=1e-4)

    print("KERNEL_OK")
</pallas_src>

<mosaic_0001>
module attributes {stable_mosaic.version = 11 : i64} {
  func.func @_stack_fused_kernel(%arg0: i32, %arg1: i32, %arg2: memref<12x4xf32, #tpu.memory_space<smem>>, %arg3: memref<4xf32, #tpu.memory_space<smem>>, %arg4: memref<1x5x4x2x128xf32, #tpu.memory_space<vmem>>, %arg5: memref<1x4x2x128xf32, #tpu.memory_space<vmem>>, %arg6: memref<1x4x2x128xf32, #tpu.memory_space<vmem>>, %arg7: memref<1x4x2x128xf32, #tpu.memory_space<vmem>>, %arg8: memref<1x4x2x128xf32, #tpu.memory_space<vmem>>) attributes {dimension_semantics = [#tpu.dimension_semantics<parallel>, #tpu.dimension_semantics<parallel>], iteration_bounds = array<i64: 2, 1>, scalar_prefetch = 0 : i64, scratch_operands = 0 : i64, tpu.core_type = #tpu.core_type<tc>, window_params = [{transform_indices = @transform_0, window_bounds = array<i64: 12, 4>}, {transform_indices = @transform_1, window_bounds = array<i64: 4>}, {transform_indices = @transform_2, window_bounds = array<i64: 1, 5, 4, 2, 128>}, {transform_indices = @transform_3, window_bounds = array<i64: 1, 4, 2, 128>}, {transform_indices = @transform_4, window_bounds = array<i64: 1, 4, 2, 128>}, {transform_indices = @transform_5, window_bounds = array<i64: 1, 4, 2, 128>}, {transform_indices = @transform_6, window_bounds = array<i64: 1, 4, 2, 128>}]} {
    %c0 = arith.constant 0 : index
    %c0_0 = arith.constant 0 : index
    %0 = memref.load %arg2[%c0, %c0_0] : memref<12x4xf32, #tpu.memory_space<smem>>
    %c0_1 = arith.constant 0 : index
    %c1 = arith.constant 1 : index
    %1 = memref.load %arg2[%c0_1, %c1] : memref<12x4xf32, #tpu.memory_space<smem>>
    %c0_2 = arith.constant 0 : index
    %c2 = arith.constant 2 : index
    %2 = memref.load %arg2[%c0_2, %c2] : memref<12x4xf32, #tpu.memory_space<smem>>
    %c0_3 = arith.constant 0 : index
    %c3 = arith.constant 3 : index
    %3 = memref.load %arg2[%c0_3, %c3] : memref<12x4xf32, #tpu.memory_space<smem>>
    %c1_4 = arith.constant 1 : index
    %c0_5 = arith.constant 0 : index
    %4 = memref.load %arg2[%c1_4, %c0_5] : memref<12x4xf32, #tpu.memory_space<smem>>
    %c1_6 = arith.constant 1 : index
    %c1_7 = arith.constant 1 : index
    %5 = memref.load %arg2[%c1_6, %c1_7] : memref<12x4xf32, #tpu.memory_space<smem>>
    %c1_8 = arith.constant 1 : index
    %c2_9 = arith.constant 2 : index
    %6 = memref.load %arg2[%c1_8, %c2_9] : memref<12x4xf32, #tpu.memory_space<smem>>
    %c1_10 = arith.constant 1 : index
    %c3_11 = arith.constant 3 : index
    %7 = memref.load %arg2[%c1_10, %c3_11] : memref<12x4xf32, #tpu.memory_space<smem>>
    %c2_12 = arith.constant 2 : index
    %c0_13 = arith.constant 0 : index
    %8 = memref.load %arg2[%c2_12, %c0_13] : memref<12x4xf32, #tpu.memory_space<smem>>
    %c2_14 = arith.constant 2 : index
    %c1_15 = arith.constant 1 : index
    %9 = memref.load %arg2[%c2_14, %c1_15] : memref<12x4xf32, #tpu.memory_space<smem>>
    %c2_16 = arith.constant 2 : index
    %c2_17 = arith.constant 2 : index
    %10 = memref.load %arg2[%c2_16, %c2_17] : memref<12x4xf32, #tpu.memory_space<smem>>
    %c2_18 = arith.constant 2 : index
    %c3_19 = arith.constant 3 : index
    %11 = memref.load %arg2[%c2_18, %c3_19] : memref<12x4xf32, #tpu.memory_space<smem>>
    %c3_20 = arith.constant 3 : index
    %c0_21 = arith.constant 0 : index
    %12 = memref.load %arg2[%c3_20, %c0_21] : memref<12x4xf32, #tpu.memory_space<smem>>
    %c3_22 = arith.constant 3 : index
    %c1_23 = arith.constant 1 : index
    %13 = memref.load %arg2[%c3_22, %c1_23] : memref<12x4xf32, #tpu.memory_space<smem>>
    %c3_24 = arith.constant 3 : index
    %c2_25 = arith.constant 2 : index
    %14 = memref.load %arg2[%c3_24, %c2_25] : memref<12x4xf32, #tpu.memory_space<smem>>
    %c3_26 = arith.constant 3 : index
    %c3_27 = arith.constant 3 : index
    %15 = memref.load %arg2[%c3_26, %c3_27] : memref<12x4xf32, #tpu.memory_space<smem>>
    %c4 = arith.constant 4 : index
    %c0_28 = arith.constant 0 : index
    %16 = memref.load %arg2[%c4, %c0_28] : memref<12x4xf32, #tpu.memory_space<smem>>
    %c4_29 = arith.constant 4 : index
    %c1_30 = arith.constant 1 : index
    %17 = memref.load %arg2[%c4_29, %c1_30] : memref<12x4xf32, #tpu.memory_space<smem>>
    %c4_31 = arith.constant 4 : index
    %c2_32 = arith.constant 2 : index
    %18 = memref.load %arg2[%c4_31, %c2_32] : memref<12x4xf32, #tpu.memory_space<smem>>
    %c4_33 = arith.constant 4 : index
    %c3_34 = arith.constant 3 : index
    %19 = memref.load %arg2[%c4_33, %c3_34] : memref<12x4xf32, #tpu.memory_space<smem>>
    %c5 = arith.constant 5 : index
    %c0_35 = arith.constant 0 : index
    %20 = memref.load %arg2[%c5, %c0_35] : memref<12x4xf32, #tpu.memory_space<smem>>
    %c5_36 = arith.constant 5 : index
    %c1_37 = arith.constant 1 : index
    %21 = memref.load %arg2[%c5_36, %c1_37] : memref<12x4xf32, #tpu.memory_space<smem>>
    %c5_38 = arith.constant 5 : index
    %c2_39 = arith.constant 2 : index
    %22 = memref.load %arg2[%c5_38, %c2_39] : memref<12x4xf32, #tpu.memory_space<smem>>
    %c5_40 = arith.constant 5 : index
    %c3_41 = arith.constant 3 : index
    %23 = memref.load %arg2[%c5_40, %c3_41] : memref<12x4xf32, #tpu.memory_space<smem>>
    %c6 = arith.constant 6 : index
    %c0_42 = arith.constant 0 : index
    %24 = memref.load %arg2[%c6, %c0_42] : memref<12x4xf32, #tpu.memory_space<smem>>
    %c6_43 = arith.constant 6 : index
    %c1_44 = arith.constant 1 : index
    %25 = memref.load %arg2[%c6_43, %c1_44] : memref<12x4xf32, #tpu.memory_space<smem>>
    %c6_45 = arith.constant 6 : index
    %c2_46 = arith.constant 2 : index
    %26 = memref.load %arg2[%c6_45, %c2_46] : memref<12x4xf32, #tpu.memory_space<smem>>
    %c6_47 = arith.constant 6 : index
    %c3_48 = arith.constant 3 : index
    %27 = memref.load %arg2[%c6_47, %c3_48] : memref<12x4xf32, #tpu.memory_space<smem>>
    %c7 = arith.constant 7 : index
    %c0_49 = arith.constant 0 : index
    %28 = memref.load %arg2[%c7, %c0_49] : memref<12x4xf32, #tpu.memory_space<smem>>
    %c7_50 = arith.constant 7 : index
    %c1_51 = arith.constant 1 : index
    %29 = memref.load %arg2[%c7_50, %c1_51] : memref<12x4xf32, #tpu.memory_space<smem>>
    %c7_52 = arith.constant 7 : index
    %c2_53 = arith.constant 2 : index
    %30 = memref.load %arg2[%c7_52, %c2_53] : memref<12x4xf32, #tpu.memory_space<smem>>
    %c7_54 = arith.constant 7 : index
    %c3_55 = arith.constant 3 : index
    %31 = memref.load %arg2[%c7_54, %c3_55] : memref<12x4xf32, #tpu.memory_space<smem>>
    %c8 = arith.constant 8 : index
    %c0_56 = arith.constant 0 : index
    %32 = memref.load %arg2[%c8, %c0_56] : memref<12x4xf32, #tpu.memory_space<smem>>
    %c8_57 = arith.constant 8 : index
    %c1_58 = arith.constant 1 : index
    %33 = memref.load %arg2[%c8_57, %c1_58] : memref<12x4xf32, #tpu.memory_space<smem>>
    %c8_59 = arith.constant 8 : index
    %c2_60 = arith.constant 2 : index
    %34 = memref.load %arg2[%c8_59, %c2_60] : memref<12x4xf32, #tpu.memory_space<smem>>
    %c8_61 = arith.constant 8 : index
    %c3_62 = arith.constant 3 : index
    %35 = memref.load %arg2[%c8_61, %c3_62] : memref<12x4xf32, #tpu.memory_space<smem>>
    %c9 = arith.constant 9 : index
    %c0_63 = arith.constant 0 : index
    %36 = memref.load %arg2[%c9, %c0_63] : memref<12x4xf32, #tpu.memory_space<smem>>
    %c9_64 = arith.constant 9 : index
    %c1_65 = arith.constant 1 : index
    %37 = memref.load %arg2[%c9_64, %c1_65] : memref<12x4xf32, #tpu.memory_space<smem>>
    %c9_66 = arith.constant 9 : index
    %c2_67 = arith.constant 2 : index
    %38 = memref.load %arg2[%c9_66, %c2_67] : memref<12x4xf32, #tpu.memory_space<smem>>
    %c9_68 = arith.constant 9 : index
    %c3_69 = arith.constant 3 : index
    %39 = memref.load %arg2[%c9_68, %c3_69] : memref<12x4xf32, #tpu.memory_space<smem>>
    %c10 = arith.constant 10 : index
    %c0_70 = arith.constant 0 : index
    %40 = memref.load %arg2[%c10, %c0_70] : memref<12x4xf32, #tpu.memory_space<smem>>
    %c10_71 = arith.constant 10 : index
    %c1_72 = arith.constant 1 : index
    %41 = memref.load %arg2[%c10_71, %c1_72] : memref<12x4xf32, #tpu.memory_space<smem>>
    %c10_73 = arith.constant 10 : index
    %c2_74 = arith.constant 2 : index
    %42 = memref.load %arg2[%c10_73, %c2_74] : memref<12x4xf32, #tpu.memory_space<smem>>
    %c10_75 = arith.constant 10 : index
    %c3_76 = arith.constant 3 : index
    %43 = memref.load %arg2[%c10_75, %c3_76] : memref<12x4xf32, #tpu.memory_space<smem>>
    %c11 = arith.constant 11 : index
    %c0_77 = arith.constant 0 : index
    %44 = memref.load %arg2[%c11, %c0_77] : memref<12x4xf32, #tpu.memory_space<smem>>
    %c11_78 = arith.constant 11 : index
    %c1_79 = arith.constant 1 : index
    %45 = memref.load %arg2[%c11_78, %c1_79] : memref<12x4xf32, #tpu.memory_space<smem>>
    %c11_80 = arith.constant 11 : index
    %c2_81 = arith.constant 2 : index
    %46 = memref.load %arg2[%c11_80, %c2_81] : memref<12x4xf32, #tpu.memory_space<smem>>
    %c11_82 = arith.constant 11 : index
    %c3_83 = arith.constant 3 : index
    %47 = memref.load %arg2[%c11_82, %c3_83] : memref<12x4xf32, #tpu.memory_space<smem>>
    %c0_84 = arith.constant 0 : index
    %48 = memref.load %arg3[%c0_84] : memref<4xf32, #tpu.memory_space<smem>>
    %c1_85 = arith.constant 1 : index
    %49 = memref.load %arg3[%c1_85] : memref<4xf32, #tpu.memory_space<smem>>
    %c2_86 = arith.constant 2 : index
    %50 = memref.load %arg3[%c2_86] : memref<4xf32, #tpu.memory_space<smem>>
    %c3_87 = arith.constant 3 : index
    %51 = memref.load %arg3[%c3_87] : memref<4xf32, #tpu.memory_space<smem>>
    %c0_88 = arith.constant 0 : index
    %c0_89 = arith.constant 0 : index
    %c0_90 = arith.constant 0 : index
    %c0_91 = arith.constant 0 : index
    %c0_92 = arith.constant 0 : index
    %52 = vector.load %arg4[%c0_88, %c0_89, %c0_90, %c0_91, %c0_92] : memref<1x5x4x2x128xf32, #tpu.memory_space<vmem>>, vector<1x1x1x2x128xf32>
    %53 = vector.shape_cast %52 : vector<1x1x1x2x128xf32> to vector<2x128xf32>
    %c0_93 = arith.constant 0 : index
    %c0_94 = arith.constant 0 : index
    %c1_95 = arith.constant 1 : index
    %c0_96 = arith.constant 0 : index
    %c0_97 = arith.constant 0 : index
    %54 = vector.load %arg4[%c0_93, %c0_94, %c1_95, %c0_96, %c0_97] : memref<1x5x4x2x128xf32, #tpu.memory_space<vmem>>, vector<1x1x1x2x128xf32>
    %55 = vector.shape_cast %54 : vector<1x1x1x2x128xf32> to vector<2x128xf32>
    %c0_98 = arith.constant 0 : index
    %c0_99 = arith.constant 0 : index
    %c2_100 = arith.constant 2 : index
    %c0_101 = arith.constant 0 : index
    %c0_102 = arith.constant 0 : index
    %56 = vector.load %arg4[%c0_98, %c0_99, %c2_100, %c0_101, %c0_102] : memref<1x5x4x2x128xf32, #tpu.memory_space<vmem>>, vector<1x1x1x2x128xf32>
    %57 = vector.shape_cast %56 : vector<1x1x1x2x128xf32> to vector<2x128xf32>
    %c0_103 = arith.constant 0 : index
    %c0_104 = arith.constant 0 : index
    %c3_105 = arith.constant 3 : index
    %c0_106 = arith.constant 0 : index
    %c0_107 = arith.constant 0 : index
    %58 = vector.load %arg4[%c0_103, %c0_104, %c3_105, %c0_106, %c0_107] : memref<1x5x4x2x128xf32, #tpu.memory_space<vmem>>, vector<1x1x1x2x128xf32>
    %59 = vector.shape_cast %58 : vector<1x1x1x2x128xf32> to vector<2x128xf32>
    %c0_108 = arith.constant 0 : index
    %c1_109 = arith.constant 1 : index
    %c0_110 = arith.constant 0 : index
    %c0_111 = arith.constant 0 : index
    %c0_112 = arith.constant 0 : index
    %60 = vector.load %arg4[%c0_108, %c1_109, %c0_110, %c0_111, %c0_112] : memref<1x5x4x2x128xf32, #tpu.memory_space<vmem>>, vector<1x1x1x2x128xf32>
    %61 = vector.shape_cast %60 : vector<1x1x1x2x128xf32> to vector<2x128xf32>
    %c0_113 = arith.constant 0 : index
    %c1_114 = arith.constant 1 : index
    %c1_115 = arith.constant 1 : index
    %c0_116 = arith.constant 0 : index
    %c0_117 = arith.constant 0 : index
    %62 = vector.load %arg4[%c0_113, %c1_114, %c1_115, %c0_116, %c0_117] : memref<1x5x4x2x128xf32, #tpu.memory_space<vmem>>, vector<1x1x1x2x128xf32>
    %63 = vector.shape_cast %62 : vector<1x1x1x2x128xf32> to vector<2x128xf32>
    %c0_118 = arith.constant 0 : index
    %c1_119 = arith.constant 1 : index
    %c2_120 = arith.constant 2 : index
    %c0_121 = arith.constant 0 : index
    %c0_122 = arith.constant 0 : index
    %64 = vector.load %arg4[%c0_118, %c1_119, %c2_120, %c0_121, %c0_122] : memref<1x5x4x2x128xf32, #tpu.memory_space<vmem>>, vector<1x1x1x2x128xf32>
    %65 = vector.shape_cast %64 : vector<1x1x1x2x128xf32> to vector<2x128xf32>
    %c0_123 = arith.constant 0 : index
    %c1_124 = arith.constant 1 : index
    %c3_125 = arith.constant 3 : index
    %c0_126 = arith.constant 0 : index
    %c0_127 = arith.constant 0 : index
    %66 = vector.load %arg4[%c0_123, %c1_124, %c3_125, %c0_126, %c0_127] : memref<1x5x4x2x128xf32, #tpu.memory_space<vmem>>, vector<1x1x1x2x128xf32>
    %67 = vector.shape_cast %66 : vector<1x1x1x2x128xf32> to vector<2x128xf32>
    %c0_128 = arith.constant 0 : index
    %c2_129 = arith.constant 2 : index
    %c0_130 = arith.constant 0 : index
    %c0_131 = arith.constant 0 : index
    %c0_132 = arith.constant 0 : index
    %68 = vector.load %arg4[%c0_128, %c2_129, %c0_130, %c0_131, %c0_132] : memref<1x5x4x2x128xf32, #tpu.memory_space<vmem>>, vector<1x1x1x2x128xf32>
    %69 = vector.shape_cast %68 : vector<1x1x1x2x128xf32> to vector<2x128xf32>
    %c0_133 = arith.constant 0 : index
    %c2_134 = arith.constant 2 : index
    %c1_135 = arith.constant 1 : index
    %c0_136 = arith.constant 0 : index
    %c0_137 = arith.constant 0 : index
    %70 = vector.load %arg4[%c0_133, %c2_134, %c1_135, %c0_136, %c0_137] : memref<1x5x4x2x128xf32, #tpu.memory_space<vmem>>, vector<1x1x1x2x128xf32>
    %71 = vector.shape_cast %70 : vector<1x1x1x2x128xf32> to vector<2x128xf32>
    %c0_138 = arith.constant 0 : index
    %c2_139 = arith.constant 2 : index
    %c2_140 = arith.constant 2 : index
    %c0_141 = arith.constant 0 : index
    %c0_142 = arith.constant 0 : index
    %72 = vector.load %arg4[%c0_138, %c2_139, %c2_140, %c0_141, %c0_142] : memref<1x5x4x2x128xf32, #tpu.memory_space<vmem>>, vector<1x1x1x2x128xf32>
    %73 = vector.shape_cast %72 : vector<1x1x1x2x128xf32> to vector<2x128xf32>
    %c0_143 = arith.constant 0 : index
    %c2_144 = arith.constant 2 : index
    %c3_145 = arith.constant 3 : index
    %c0_146 = arith.constant 0 : index
    %c0_147 = arith.constant 0 : index
    %74 = vector.load %arg4[%c0_143, %c2_144, %c3_145, %c0_146, %c0_147] : memref<1x5x4x2x128xf32, #tpu.memory_space<vmem>>, vector<1x1x1x2x128xf32>
    %75 = vector.shape_cast %74 : vector<1x1x1x2x128xf32> to vector<2x128xf32>
    %c0_148 = arith.constant 0 : index
    %c3_149 = arith.constant 3 : index
    %c0_150 = arith.constant 0 : index
    %c0_151 = arith.constant 0 : index
    %c0_152 = arith.constant 0 : index
    %76 = vector.load %arg4[%c0_148, %c3_149, %c0_150, %c0_151, %c0_152] : memref<1x5x4x2x128xf32, #tpu.memory_space<vmem>>, vector<1x1x1x2x128xf32>
    %77 = vector.shape_cast %76 : vector<1x1x1x2x128xf32> to vector<2x128xf32>
    %c0_153 = arith.constant 0 : index
    %c3_154 = arith.constant 3 : index
    %c1_155 = arith.constant 1 : index
    %c0_156 = arith.constant 0 : index
    %c0_157 = arith.constant 0 : index
    %78 = vector.load %arg4[%c0_153, %c3_154, %c1_155, %c0_156, %c0_157] : memref<1x5x4x2x128xf32, #tpu.memory_space<vmem>>, vector<1x1x1x2x128xf32>
    %79 = vector.shape_cast %78 : vector<1x1x1x2x128xf32> to vector<2x128xf32>
    %c0_158 = arith.constant 0 : index
    %c3_159 = arith.constant 3 : index
    %c2_160 = arith.constant 2 : index
    %c0_161 = arith.constant 0 : index
    %c0_162 = arith.constant 0 : index
    %80 = vector.load %arg4[%c0_158, %c3_159, %c2_160, %c0_161, %c0_162] : memref<1x5x4x2x128xf32, #tpu.memory_space<vmem>>, vector<1x1x1x2x128xf32>
    %81 = vector.shape_cast %80 : vector<1x1x1x2x128xf32> to vector<2x128xf32>
    %c0_163 = arith.constant 0 : index
    %c3_164 = arith.constant 3 : index
    %c3_165 = arith.constant 3 : index
    %c0_166 = arith.constant 0 : index
    %c0_167 = arith.constant 0 : index
    %82 = vector.load %arg4[%c0_163, %c3_164, %c3_165, %c0_166, %c0_167] : memref<1x5x4x2x128xf32, #tpu.memory_space<vmem>>, vector<1x1x1x2x128xf32>
    %83 = vector.shape_cast %82 : vector<1x1x1x2x128xf32> to vector<2x128xf32>
    %c0_168 = arith.constant 0 : index
    %c4_169 = arith.constant 4 : index
    %c0_170 = arith.constant 0 : index
    %c0_171 = arith.constant 0 : index
    %c0_172 = arith.constant 0 : index
    %84 = vector.load %arg4[%c0_168, %c4_169, %c0_170, %c0_171, %c0_172] : memref<1x5x4x2x128xf32, #tpu.memory_space<vmem>>, vector<1x1x1x2x128xf32>
    %85 = vector.shape_cast %84 : vector<1x1x1x2x128xf32> to vector<2x128xf32>
    %c0_173 = arith.constant 0 : index
    %c4_174 = arith.constant 4 : index
    %c1_175 = arith.constant 1 : index
    %c0_176 = arith.constant 0 : index
    %c0_177 = arith.constant 0 : index
    %86 = vector.load %arg4[%c0_173, %c4_174, %c1_175, %c0_176, %c0_177] : memref<1x5x4x2x128xf32, #tpu.memory_space<vmem>>, vector<1x1x1x2x128xf32>
    %87 = vector.shape_cast %86 : vector<1x1x1x2x128xf32> to vector<2x128xf32>
    %c0_178 = arith.constant 0 : index
    %c4_179 = arith.constant 4 : index
    %c2_180 = arith.constant 2 : index
    %c0_181 = arith.constant 0 : index
    %c0_182 = arith.constant 0 : index
    %88 = vector.load %arg4[%c0_178, %c4_179, %c2_180, %c0_181, %c0_182] : memref<1x5x4x2x128xf32, #tpu.memory_space<vmem>>, vector<1x1x1x2x128xf32>
    %89 = vector.shape_cast %88 : vector<1x1x1x2x128xf32> to vector<2x128xf32>
    %c0_183 = arith.constant 0 : index
    %c4_184 = arith.constant 4 : index
    %c3_185 = arith.constant 3 : index
    %c0_186 = arith.constant 0 : index
    %c0_187 = arith.constant 0 : index
    %90 = vector.load %arg4[%c0_183, %c4_184, %c3_185, %c0_186, %c0_187] : memref<1x5x4x2x128xf32, #tpu.memory_space<vmem>>, vector<1x1x1x2x128xf32>
    %91 = vector.shape_cast %90 : vector<1x1x1x2x128xf32> to vector<2x128xf32>
    %92 = vector.broadcast %0 : f32 to vector<2x128xf32>
    %93 = arith.mulf %53, %92 : vector<2x128xf32>
    %94 = vector.broadcast %4 : f32 to vector<2x128xf32>
    %95 = arith.mulf %55, %94 : vector<2x128xf32>
    %96 = arith.addf %93, %95 : vector<2x128xf32>
    %97 = vector.broadcast %8 : f32 to vector<2x128xf32>
    %98 = arith.mulf %57, %97 : vector<2x128xf32>
    %99 = arith.addf %96, %98 : vector<2x128xf32>
    %100 = vector.broadcast %12 : f32 to vector<2x128xf32>
    %101 = arith.mulf %59, %100 : vector<2x128xf32>
    %102 = arith.addf %99, %101 : vector<2x128xf32>
    %103 = vector.broadcast %16 : f32 to vector<2x128xf32>
    %104 = arith.mulf %61, %103 : vector<2x128xf32>
    %105 = arith.addf %102, %104 : vector<2x128xf32>
    %106 = vector.broadcast %20 : f32 to vector<2x128xf32>
    %107 = arith.mulf %63, %106 : vector<2x128xf32>
    %108 = arith.addf %105, %107 : vector<2x128xf32>
    %109 = vector.broadcast %24 : f32 to vector<2x128xf32>
    %110 = arith.mulf %65, %109 : vector<2x128xf32>
    %111 = arith.addf %108, %110 : vector<2x128xf32>
    %112 = vector.broadcast %28 : f32 to vector<2x128xf32>
    %113 = arith.mulf %67, %112 : vector<2x128xf32>
    %114 = arith.addf %111, %113 : vector<2x128xf32>
    %115 = vector.broadcast %32 : f32 to vector<2x128xf32>
    %116 = arith.mulf %69, %115 : vector<2x128xf32>
    %117 = arith.addf %114, %116 : vector<2x128xf32>
    %118 = vector.broadcast %36 : f32 to vector<2x128xf32>
    %119 = arith.mulf %71, %118 : vector<2x128xf32>
    %120 = arith.addf %117, %119 : vector<2x128xf32>
    %121 = vector.broadcast %40 : f32 to vector<2x128xf32>
    %122 = arith.mulf %73, %121 : vector<2x128xf32>
    %123 = arith.addf %120, %122 : vector<2x128xf32>
    %124 = vector.broadcast %44 : f32 to vector<2x128xf32>
    %125 = arith.mulf %75, %124 : vector<2x128xf32>
    %126 = arith.addf %123, %125 : vector<2x128xf32>
    %127 = vector.broadcast %48 : f32 to vector<2x128xf32>
    %128 = arith.addf %126, %127 : vector<2x128xf32>
    %129 = vector.broadcast %1 : f32 to vector<2x128xf32>
    %130 = arith.mulf %53, %129 : vector<2x128xf32>
    %131 = vector.broadcast %5 : f32 to vector<2x128xf32>
    %132 = arith.mulf %55, %131 : vector<2x128xf32>
    %133 = arith.addf %130, %132 : vector<2x128xf32>
    %134 = vector.broadcast %9 : f32 to vector<2x128xf32>
    %135 = arith.mulf %57, %134 : vector<2x128xf32>
    %136 = arith.addf %133, %135 : vector<2x128xf32>
    %137 = vector.broadcast %13 : f32 to vector<2x128xf32>
    %138 = arith.mulf %59, %137 : vector<2x128xf32>
    %139 = arith.addf %136, %138 : vector<2x128xf32>
    %140 = vector.broadcast %17 : f32 to vector<2x128xf32>
    %141 = arith.mulf %61, %140 : vector<2x128xf32>
    %142 = arith.addf %139, %141 : vector<2x128xf32>
    %143 = vector.broadcast %21 : f32 to vector<2x128xf32>
    %144 = arith.mulf %63, %143 : vector<2x128xf32>
    %145 = arith.addf %142, %144 : vector<2x128xf32>
    %146 = vector.broadcast %25 : f32 to vector<2x128xf32>
    %147 = arith.mulf %65, %146 : vector<2x128xf32>
    %148 = arith.addf %145, %147 : vector<2x128xf32>
    %149 = vector.broadcast %29 : f32 to vector<2x128xf32>
    %150 = arith.mulf %67, %149 : vector<2x128xf32>
    %151 = arith.addf %148, %150 : vector<2x128xf32>
    %152 = vector.broadcast %33 : f32 to vector<2x128xf32>
    %153 = arith.mulf %69, %152 : vector<2x128xf32>
    %154 = arith.addf %151, %153 : vector<2x128xf32>
    %155 = vector.broadcast %37 : f32 to vector<2x128xf32>
    %156 = arith.mulf %71, %155 : vector<2x128xf32>
    %157 = arith.addf %154, %156 : vector<2x128xf32>
    %158 = vector.broadcast %41 : f32 to vector<2x128xf32>
    %159 = arith.mulf %73, %158 : vector<2x128xf32>
    %160 = arith.addf %157, %159 : vector<2x128xf32>
    %161 = vector.broadcast %45 : f32 to vector<2x128xf32>
    %162 = arith.mulf %75, %161 : vector<2x128xf32>
    %163 = arith.addf %160, %162 : vector<2x128xf32>
    %164 = vector.broadcast %49 : f32 to vector<2x128xf32>
    %165 = arith.addf %163, %164 : vector<2x128xf32>
    %166 = vector.broadcast %2 : f32 to vector<2x128xf32>
    %167 = arith.mulf %53, %166 : vector<2x128xf32>
    %168 = vector.broadcast %6 : f32 to vector<2x128xf32>
    %169 = arith.mulf %55, %168 : vector<2x128xf32>
    %170 = arith.addf %167, %169 : vector<2x128xf32>
    %171 = vector.broadcast %10 : f32 to vector<2x128xf32>
    %172 = arith.mulf %57, %171 : vector<2x128xf32>
    %173 = arith.addf %170, %172 : vector<2x128xf32>
    %174 = vector.broadcast %14 : f32 to vector<2x128xf32>
    %175 = arith.mulf %59, %174 : vector<2x128xf32>
    %176 = arith.addf %173, %175 : vector<2x128xf32>
    %177 = vector.broadcast %18 : f32 to vector<2x128xf32>
    %178 = arith.mulf %61, %177 : vector<2x128xf32>
    %179 = arith.addf %176, %178 : vector<2x128xf32>
    %180 = vector.broadcast %22 : f32 to vector<2x128xf32>
    %181 = arith.mulf %63, %180 : vector<2x128xf32>
    %182 = arith.addf %179, %181 : vector<2x128xf32>
    %183 = vector.broadcast %26 : f32 to vector<2x128xf32>
    %184 = arith.mulf %65, %183 : vector<2x128xf32>
    %185 = arith.addf %182, %184 : vector<2x128xf32>
    %186 = vector.broadcast %30 : f32 to vector<2x128xf32>
    %187 = arith.mulf %67, %186 : vector<2x128xf32>
    %188 = arith.addf %185, %187 : vector<2x128xf32>
    %189 = vector.broadcast %34 : f32 to vector<2x128xf32>
    %190 = arith.mulf %69, %189 : vector<2x128xf32>
    %191 = arith.addf %188, %190 : vector<2x128xf32>
    %192 = vector.broadcast %38 : f32 to vector<2x128xf32>
    %193 = arith.mulf %71, %192 : vector<2x128xf32>
    %194 = arith.addf %191, %193 : vector<2x128xf32>
    %195 = vector.broadcast %42 : f32 to vector<2x128xf32>
    %196 = arith.mulf %73, %195 : vector<2x128xf32>
    %197 = arith.addf %194, %196 : vector<2x128xf32>
    %198 = vector.broadcast %46 : f32 to vector<2x128xf32>
    %199 = arith.mulf %75, %198 : vector<2x128xf32>
    %200 = arith.addf %197, %199 : vector<2x128xf32>
    %201 = vector.broadcast %50 : f32 to vector<2x128xf32>
    %202 = arith.addf %200, %201 : vector<2x128xf32>
    %203 = vector.broadcast %3 : f32 to vector<2x128xf32>
    %204 = arith.mulf %53, %203 : vector<2x128xf32>
    %205 = vector.broadcast %7 : f32 to vector<2x128xf32>
    %206 = arith.mulf %55, %205 : vector<2x128xf32>
    %207 = arith.addf %204, %206 : vector<2x128xf32>
    %208 = vector.broadcast %11 : f32 to vector<2x128xf32>
    %209 = arith.mulf %57, %208 : vector<2x128xf32>
    %210 = arith.addf %207, %209 : vector<2x128xf32>
    %211 = vector.broadcast %15 : f32 to vector<2x128xf32>
    %212 = arith.mulf %59, %211 : vector<2x128xf32>
    %213 = arith.addf %210, %212 : vector<2x128xf32>
    %214 = vector.broadcast %19 : f32 to vector<2x128xf32>
    %215 = arith.mulf %61, %214 : vector<2x128xf32>
    %216 = arith.addf %213, %215 : vector<2x128xf32>
    %217 = vector.broadcast %23 : f32 to vector<2x128xf32>
    %218 = arith.mulf %63, %217 : vector<2x128xf32>
    %219 = arith.addf %216, %218 : vector<2x128xf32>
    %220 = vector.broadcast %27 : f32 to vector<2x128xf32>
    %221 = arith.mulf %65, %220 : vector<2x128xf32>
    %222 = arith.addf %219, %221 : vector<2x128xf32>
    %223 = vector.broadcast %31 : f32 to vector<2x128xf32>
    %224 = arith.mulf %67, %223 : vector<2x128xf32>
    %225 = arith.addf %222, %224 : vector<2x128xf32>
    %226 = vector.broadcast %35 : f32 to vector<2x128xf32>
    %227 = arith.mulf %69, %226 : vector<2x128xf32>
    %228 = arith.addf %225, %227 : vector<2x128xf32>
    %229 = vector.broadcast %39 : f32 to vector<2x128xf32>
    %230 = arith.mulf %71, %229 : vector<2x128xf32>
    %231 = arith.addf %228, %230 : vector<2x128xf32>
    %232 = vector.broadcast %43 : f32 to vector<2x128xf32>
    %233 = arith.mulf %73, %232 : vector<2x128xf32>
    %234 = arith.addf %231, %233 : vector<2x128xf32>
    %235 = vector.broadcast %47 : f32 to vector<2x128xf32>
    %236 = arith.mulf %75, %235 : vector<2x128xf32>
    %237 = arith.addf %234, %236 : vector<2x128xf32>
    %238 = vector.broadcast %51 : f32 to vector<2x128xf32>
    %239 = arith.addf %237, %238 : vector<2x128xf32>
    %c0_188 = arith.constant 0 : index
    %c0_189 = arith.constant 0 : index
    %c0_190 = arith.constant 0 : index
    %c0_191 = arith.constant 0 : index
    %240 = vector.load %arg5[%c0_188, %c0_189, %c0_190, %c0_191] : memref<1x4x2x128xf32, #tpu.memory_space<vmem>>, vector<1x1x2x128xf32>
    %241 = vector.shape_cast %240 : vector<1x1x2x128xf32> to vector<2x128xf32>
    %242 = vector.shape_cast %128 : vector<2x128xf32> to vector<1x1x2x128xf32>
    tpu.vector_store %arg5[%c0_188, %c0_189, %c0_190, %c0_191], %242 {strides = array<i32>} : memref<1x4x2x128xf32, #tpu.memory_space<vmem>>, vector<1x1x2x128xf32>,
    %c0_192 = arith.constant 0 : index
    %c1_193 = arith.constant 1 : index
    %c0_194 = arith.constant 0 : index
    %c0_195 = arith.constant 0 : index
    %243 = vector.load %arg5[%c0_192, %c1_193, %c0_194, %c0_195] : memref<1x4x2x128xf32, #tpu.memory_space<vmem>>, vector<1x1x2x128xf32>
    %244 = vector.shape_cast %243 : vector<1x1x2x128xf32> to vector<2x128xf32>
    %245 = vector.shape_cast %165 : vector<2x128xf32> to vector<1x1x2x128xf32>
    tpu.vector_store %arg5[%c0_192, %c1_193, %c0_194, %c0_195], %245 {strides = array<i32>} : memref<1x4x2x128xf32, #tpu.memory_space<vmem>>, vector<1x1x2x128xf32>,
    %c0_196 = arith.constant 0 : index
    %c2_197 = arith.constant 2 : index
    %c0_198 = arith.constant 0 : index
    %c0_199 = arith.constant 0 : index
    %246 = vector.load %arg5[%c0_196, %c2_197, %c0_198, %c0_199] : memref<1x4x2x128xf32, #tpu.memory_space<vmem>>, vector<1x1x2x128xf32>
    %247 = vector.shape_cast %246 : vector<1x1x2x128xf32> to vector<2x128xf32>
    %248 = vector.shape_cast %202 : vector<2x128xf32> to vector<1x1x2x128xf32>
    tpu.vector_store %arg5[%c0_196, %c2_197, %c0_198, %c0_199], %248 {strides = array<i32>} : memref<1x4x2x128xf32, #tpu.memory_space<vmem>>, vector<1x1x2x128xf32>,
    %c0_200 = arith.constant 0 : index
    %c3_201 = arith.constant 3 : index
    %c0_202 = arith.constant 0 : index
    %c0_203 = arith.constant 0 : index
    %249 = vector.load %arg5[%c0_200, %c3_201, %c0_202, %c0_203] : memref<1x4x2x128xf32, #tpu.memory_space<vmem>>, vector<1x1x2x128xf32>
    %250 = vector.shape_cast %249 : vector<1x1x2x128xf32> to vector<2x128xf32>
    %251 = vector.shape_cast %239 : vector<2x128xf32> to vector<1x1x2x128xf32>
    tpu.vector_store %arg5[%c0_200, %c3_201, %c0_202, %c0_203], %251 {strides = array<i32>} : memref<1x4x2x128xf32, #tpu.memory_space<vmem>>, vector<1x1x2x128xf32>,
    %252 = vector.broadcast %0 : f32 to vector<2x128xf32>
    %253 = arith.mulf %61, %252 : vector<2x128xf32>
    %254 = vector.broadcast %4 : f32 to vector<2x128xf32>
    %255 = arith.mulf %63, %254 : vector<2x128xf32>
    %256 = arith.addf %253, %255 : vector<2x128xf32>
    %257 = vector.broadcast %8 : f32 to vector<2x128xf32>
    %258 = arith.mulf %65, %257 : vector<2x128xf32>
    %259 = arith.addf %256, %258 : vector<2x128xf32>
    %260 = vector.broadcast %12 : f32 to vector<2x128xf32>
    %261 = arith.mulf %67, %260 : vector<2x128xf32>
    %262 = arith.addf %259, %261 : vector<2x128xf32>
    %263 = vector.broadcast %16 : f32 to vector<2x128xf32>
    %264 = arith.mulf %69, %263 : vector<2x128xf32>
    %265 = arith.addf %262, %264 : vector<2x128xf32>
    %266 = vector.broadcast %20 : f32 to vector<2x128xf32>
    %267 = arith.mulf %71, %266 : vector<2x128xf32>
    %268 = arith.addf %265, %267 : vector<2x128xf32>
    %269 = vector.broadcast %24 : f32 to vector<2x128xf32>
    %270 = arith.mulf %73, %269 : vector<2x128xf32>
    %271 = arith.addf %268, %270 : vector<2x128xf32>
    %272 = vector.broadcast %28 : f32 to vector<2x128xf32>
    %273 = arith.mulf %75, %272 : vector<2x128xf32>
    %274 = arith.addf %271, %273 : vector<2x128xf32>
    %275 = vector.broadcast %32 : f32 to vector<2x128xf32>
    %276 = arith.mulf %77, %275 : vector<2x128xf32>
    %277 = arith.addf %274, %276 : vector<2x128xf32>
    %278 = vector.broadcast %36 : f32 to vector<2x128xf32>
    %279 = arith.mulf %79, %278 : vector<2x128xf32>
    %280 = arith.addf %277, %279 : vector<2x128xf32>
    %281 = vector.broadcast %40 : f32 to vector<2x128xf32>
    %282 = arith.mulf %81, %281 : vector<2x128xf32>
    %283 = arith.addf %280, %282 : vector<2x128xf32>
    %284 = vector.broadcast %44 : f32 to vector<2x128xf32>
    %285 = arith.mulf %83, %284 : vector<2x128xf32>
    %286 = arith.addf %283, %285 : vector<2x128xf32>
    %287 = vector.broadcast %48 : f32 to vector<2x128xf32>
    %288 = arith.addf %286, %287 : vector<2x128xf32>
    %289 = vector.broadcast %1 : f32 to vector<2x128xf32>
    %290 = arith.mulf %61, %289 : vector<2x128xf32>
    %291 = vector.broadcast %5 : f32 to vector<2x128xf32>
    %292 = arith.mulf %63, %291 : vector<2x128xf32>
    %293 = arith.addf %290, %292 : vector<2x128xf32>
    %294 = vector.broadcast %9 : f32 to vector<2x128xf32>
    %295 = arith.mulf %65, %294 : vector<2x128xf32>
    %296 = arith.addf %293, %295 : vector<2x128xf32>
    %297 = vector.broadcast %13 : f32 to vector<2x128xf32>
    %298 = arith.mulf %67, %297 : vector<2x128xf32>
    %299 = arith.addf %296, %298 : vector<2x128xf32>
    %300 = vector.broadcast %17 : f32 to vector<2x128xf32>
    %301 = arith.mulf %69, %300 : vector<2x128xf32>
    %302 = arith.addf %299, %301 : vector<2x128xf32>
    %303 = vector.broadcast %21 : f32 to vector<2x128xf32>
    %304 = arith.mulf %71, %303 : vector<2x128xf32>
    %305 = arith.addf %302, %304 : vector<2x128xf32>
    %306 = vector.broadcast %25 : f32 to vector<2x128xf32>
    %307 = arith.mulf %73, %306 : vector<2x128xf32>
    %308 = arith.addf %305, %307 : vector<2x128xf32>
    %309 = vector.broadcast %29 : f32 to vector<2x128xf32>
    %310 = arith.mulf %75, %309 : vector<2x128xf32>
    %311 = arith.addf %308, %310 : vector<2x128xf32>
    %312 = vector.broadcast %33 : f32 to vector<2x128xf32>
    %313 = arith.mulf %77, %312 : vector<2x128xf32>
    %314 = arith.addf %311, %313 : vector<2x128xf32>
    %315 = vector.broadcast %37 : f32 to vector<2x128xf32>
    %316 = arith.mulf %79, %315 : vector<2x128xf32>
    %317 = arith.addf %314, %316 : vector<2x128xf32>
    %318 = vector.broadcast %41 : f32 to vector<2x128xf32>
    %319 = arith.mulf %81, %318 : vector<2x128xf32>
    %320 = arith.addf %317, %319 : vector<2x128xf32>
    %321 = vector.broadcast %45 : f32 to vector<2x128xf32>
    %322 = arith.mulf %83, %321 : vector<2x128xf32>
    %323 = arith.addf %320, %322 : vector<2x128xf32>
    %324 = vector.broadcast %49 : f32 to vector<2x128xf32>
    %325 = arith.addf %323, %324 : vector<2x128xf32>
    %326 = vector.broadcast %2 : f32 to vector<2x128xf32>
    %327 = arith.mulf %61, %326 : vector<2x128xf32>
    %328 = vector.broadcast %6 : f32 to vector<2x128xf32>
    %329 = arith.mulf %63, %328 : vector<2x128xf32>
    %330 = arith.addf %327, %329 : vector<2x128xf32>
    %331 = vector.broadcast %10 : f32 to vector<2x128xf32>
    %332 = arith.mulf %65, %331 : vector<2x128xf32>
    %333 = arith.addf %330, %332 : vector<2x128xf32>
    %334 = vector.broadcast %14 : f32 to vector<2x128xf32>
    %335 = arith.mulf %67, %334 : vector<2x128xf32>
    %336 = arith.addf %333, %335 : vector<2x128xf32>
    %337 = vector.broadcast %18 : f32 to vector<2x128xf32>
    %338 = arith.mulf %69, %337 : vector<2x128xf32>
    %339 = arith.addf %336, %338 : vector<2x128xf32>
    %340 = vector.broadcast %22 : f32 to vector<2x128xf32>
    %341 = arith.mulf %71, %340 : vector<2x128xf32>
    %342 = arith.addf %339, %341 : vector<2x128xf32>
    %343 = vector.broadcast %26 : f32 to vector<2x128xf32>
    %344 = arith.mulf %73, %343 : vector<2x128xf32>
    %345 = arith.addf %342, %344 : vector<2x128xf32>
    %346 = vector.broadcast %30 : f32 to vector<2x128xf32>
    %347 = arith.mulf %75, %346 : vector<2x128xf32>
    %348 = arith.addf %345, %347 : vector<2x128xf32>
    %349 = vector.broadcast %34 : f32 to vector<2x128xf32>
    %350 = arith.mulf %77, %349 : vector<2x128xf32>
    %351 = arith.addf %348, %350 : vector<2x128xf32>
    %352 = vector.broadcast %38 : f32 to vector<2x128xf32>
    %353 = arith.mulf %79, %352 : vector<2x128xf32>
    %354 = arith.addf %351, %353 : vector<2x128xf32>
    %355 = vector.broadcast %42 : f32 to vector<2x128xf32>
    %356 = arith.mulf %81, %355 : vector<2x128xf32>
    %357 = arith.addf %354, %356 : vector<2x128xf32>
    %358 = vector.broadcast %46 : f32 to vector<2x128xf32>
    %359 = arith.mulf %83, %358 : vector<2x128xf32>
    %360 = arith.addf %357, %359 : vector<2x128xf32>
    %361 = vector.broadcast %50 : f32 to vector<2x128xf32>
    %362 = arith.addf %360, %361 : vector<2x128xf32>
    %363 = vector.broadcast %3 : f32 to vector<2x128xf32>
    %364 = arith.mulf %61, %363 : vector<2x128xf32>
    %365 = vector.broadcast %7 : f32 to vector<2x128xf32>
    %366 = arith.mulf %63, %365 : vector<2x128xf32>
    %367 = arith.addf %364, %366 : vector<2x128xf32>
    %368 = vector.broadcast %11 : f32 to vector<2x128xf32>
    %369 = arith.mulf %65, %368 : vector<2x128xf32>
    %370 = arith.addf %367, %369 : vector<2x128xf32>
    %371 = vector.broadcast %15 : f32 to vector<2x128xf32>
    %372 = arith.mulf %67, %371 : vector<2x128xf32>
    %373 = arith.addf %370, %372 : vector<2x128xf32>
    %374 = vector.broadcast %19 : f32 to vector<2x128xf32>
    %375 = arith.mulf %69, %374 : vector<2x128xf32>
    %376 = arith.addf %373, %375 : vector<2x128xf32>
    %377 = vector.broadcast %23 : f32 to vector<2x128xf32>
    %378 = arith.mulf %71, %377 : vector<2x128xf32>
    %379 = arith.addf %376, %378 : vector<2x128xf32>
    %380 = vector.broadcast %27 : f32 to vector<2x128xf32>
    %381 = arith.mulf %73, %380 : vector<2x128xf32>
    %382 = arith.addf %379, %381 : vector<2x128xf32>
    %383 = vector.broadcast %31 : f32 to vector<2x128xf32>
    %384 = arith.mulf %75, %383 : vector<2x128xf32>
    %385 = arith.addf %382, %384 : vector<2x128xf32>
    %386 = vector.broadcast %35 : f32 to vector<2x128xf32>
    %387 = arith.mulf %77, %386 : vector<2x128xf32>
    %388 = arith.addf %385, %387 : vector<2x128xf32>
    %389 = vector.broadcast %39 : f32 to vector<2x128xf32>
    %390 = arith.mulf %79, %389 : vector<2x128xf32>
    %391 = arith.addf %388, %390 : vector<2x128xf32>
    %392 = vector.broadcast %43 : f32 to vector<2x128xf32>
    %393 = arith.mulf %81, %392 : vector<2x128xf32>
    %394 = arith.addf %391, %393 : vector<2x128xf32>
    %395 = vector.broadcast %47 : f32 to vector<2x128xf32>
    %396 = arith.mulf %83, %395 : vector<2x128xf32>
    %397 = arith.addf %394, %396 : vector<2x128xf32>
    %398 = vector.broadcast %51 : f32 to vector<2x128xf32>
    %399 = arith.addf %397, %398 : vector<2x128xf32>
    %c0_204 = arith.constant 0 : index
    %c0_205 = arith.constant 0 : index
    %c0_206 = arith.constant 0 : index
    %c0_207 = arith.constant 0 : index
    %400 = vector.load %arg6[%c0_204, %c0_205, %c0_206, %c0_207] : memref<1x4x2x128xf32, #tpu.memory_space<vmem>>, vector<1x1x2x128xf32>
    %401 = vector.shape_cast %400 : vector<1x1x2x128xf32> to vector<2x128xf32>
    %402 = vector.shape_cast %288 : vector<2x128xf32> to vector<1x1x2x128xf32>
    tpu.vector_store %arg6[%c0_204, %c0_205, %c0_206, %c0_207], %402 {strides = array<i32>} : memref<1x4x2x128xf32, #tpu.memory_space<vmem>>, vector<1x1x2x128xf32>,
    %c0_208 = arith.constant 0 : index
    %c1_209 = arith.constant 1 : index
    %c0_210 = arith.constant 0 : index
    %c0_211 = arith.constant 0 : index
    %403 = vector.load %arg6[%c0_208, %c1_209, %c0_210, %c0_211] : memref<1x4x2x128xf32, #tpu.memory_space<vmem>>, vector<1x1x2x128xf32>
    %404 = vector.shape_cast %403 : vector<1x1x2x128xf32> to vector<2x128xf32>
    %405 = vector.shape_cast %325 : vector<2x128xf32> to vector<1x1x2x128xf32>
    tpu.vector_store %arg6[%c0_208, %c1_209, %c0_210, %c0_211], %405 {strides = array<i32>} : memref<1x4x2x128xf32, #tpu.memory_space<vmem>>, vector<1x1x2x128xf32>,
    %c0_212 = arith.constant 0 : index
    %c2_213 = arith.constant 2 : index
    %c0_214 = arith.constant 0 : index
    %c0_215 = arith.constant 0 : index
    %406 = vector.load %arg6[%c0_212, %c2_213, %c0_214, %c0_215] : memref<1x4x2x128xf32, #tpu.memory_space<vmem>>, vector<1x1x2x128xf32>
    %407 = vector.shape_cast %406 : vector<1x1x2x128xf32> to vector<2x128xf32>
    %408 = vector.shape_cast %362 : vector<2x128xf32> to vector<1x1x2x128xf32>
    tpu.vector_store %arg6[%c0_212, %c2_213, %c0_214, %c0_215], %408 {strides = array<i32>} : memref<1x4x2x128xf32, #tpu.memory_space<vmem>>, vector<1x1x2x128xf32>,
    %c0_216 = arith.constant 0 : index
    %c3_217 = arith.constant 3 : index
    %c0_218 = arith.constant 0 : index
    %c0_219 = arith.constant 0 : index
    %409 = vector.load %arg6[%c0_216, %c3_217, %c0_218, %c0_219] : memref<1x4x2x128xf32, #tpu.memory_space<vmem>>, vector<1x1x2x128xf32>
    %410 = vector.shape_cast %409 : vector<1x1x2x128xf32> to vector<2x128xf32>
    %411 = vector.shape_cast %399 : vector<2x128xf32> to vector<1x1x2x128xf32>
    tpu.vector_store %arg6[%c0_216, %c3_217, %c0_218, %c0_219], %411 {strides = array<i32>} : memref<1x4x2x128xf32, #tpu.memory_space<vmem>>, vector<1x1x2x128xf32>,
    %412 = vector.broadcast %0 : f32 to vector<2x128xf32>
    %413 = arith.mulf %69, %412 : vector<2x128xf32>
    %414 = vector.broadcast %4 : f32 to vector<2x128xf32>
    %415 = arith.mulf %71, %414 : vector<2x128xf32>
    %416 = arith.addf %413, %415 : vector<2x128xf32>
    %417 = vector.broadcast %8 : f32 to vector<2x128xf32>
    %418 = arith.mulf %73, %417 : vector<2x128xf32>
    %419 = arith.addf %416, %418 : vector<2x128xf32>
    %420 = vector.broadcast %12 : f32 to vector<2x128xf32>
    %421 = arith.mulf %75, %420 : vector<2x128xf32>
    %422 = arith.addf %419, %421 : vector<2x128xf32>
    %423 = vector.broadcast %16 : f32 to vector<2x128xf32>
    %424 = arith.mulf %77, %423 : vector<2x128xf32>
    %425 = arith.addf %422, %424 : vector<2x128xf32>
    %426 = vector.broadcast %20 : f32 to vector<2x128xf32>
    %427 = arith.mulf %79, %426 : vector<2x128xf32>
    %428 = arith.addf %425, %427 : vector<2x128xf32>
    %429 = vector.broadcast %24 : f32 to vector<2x128xf32>
    %430 = arith.mulf %81, %429 : vector<2x128xf32>
    %431 = arith.addf %428, %430 : vector<2x128xf32>
    %432 = vector.broadcast %28 : f32 to vector<2x128xf32>
    %433 = arith.mulf %83, %432 : vector<2x128xf32>
    %434 = arith.addf %431, %433 : vector<2x128xf32>
    %435 = vector.broadcast %32 : f32 to vector<2x128xf32>
    %436 = arith.mulf %85, %435 : vector<2x128xf32>
    %437 = arith.addf %434, %436 : vector<2x128xf32>
    %438 = vector.broadcast %36 : f32 to vector<2x128xf32>
    %439 = arith.mulf %87, %438 : vector<2x128xf32>
    %440 = arith.addf %437, %439 : vector<2x128xf32>
    %441 = vector.broadcast %40 : f32 to vector<2x128xf32>
    %442 = arith.mulf %89, %441 : vector<2x128xf32>
    %443 = arith.addf %440, %442 : vector<2x128xf32>
    %444 = vector.broadcast %44 : f32 to vector<2x128xf32>
    %445 = arith.mulf %91, %444 : vector<2x128xf32>
    %446 = arith.addf %443, %445 : vector<2x128xf32>
    %447 = vector.broadcast %48 : f32 to vector<2x128xf32>
    %448 = arith.addf %446, %447 : vector<2x128xf32>
    %449 = vector.broadcast %1 : f32 to vector<2x128xf32>
    %450 = arith.mulf %69, %449 : vector<2x128xf32>
    %451 = vector.broadcast %5 : f32 to vector<2x128xf32>
    %452 = arith.mulf %71, %451 : vector<2x128xf32>
    %453 = arith.addf %450, %452 : vector<2x128xf32>
    %454 = vector.broadcast %9 : f32 to vector<2x128xf32>
    %455 = arith.mulf %73, %454 : vector<2x128xf32>
    %456 = arith.addf %453, %455 : vector<2x128xf32>
    %457 = vector.broadcast %13 : f32 to vector<2x128xf32>
    %458 = arith.mulf %75, %457 : vector<2x128xf32>
    %459 = arith.addf %456, %458 : vector<2x128xf32>
    %460 = vector.broadcast %17 : f32 to vector<2x128xf32>
    %461 = arith.mulf %77, %460 : vector<2x128xf32>
    %462 = arith.addf %459, %461 : vector<2x128xf32>
    %463 = vector.broadcast %21 : f32 to vector<2x128xf32>
    %464 = arith.mulf %79, %463 : vector<2x128xf32>
    %465 = arith.addf %462, %464 : vector<2x128xf32>
    %466 = vector.broadcast %25 : f32 to vector<2x128xf32>
    %467 = arith.mulf %81, %466 : vector<2x128xf32>
    %468 = arith.addf %465, %467 : vector<2x128xf32>
    %469 = vector.broadcast %29 : f32 to vector<2x128xf32>
    %470 = arith.mulf %83, %469 : vector<2x128xf32>
    %471 = arith.addf %468, %470 : vector<2x128xf32>
    %472 = vector.broadcast %33 : f32 to vector<2x128xf32>
    %473 = arith.mulf %85, %472 : vector<2x128xf32>
    %474 = arith.addf %471, %473 : vector<2x128xf32>
    %475 = vector.broadcast %37 : f32 to vector<2x128xf32>
    %476 = arith.mulf %87, %475 : vector<2x128xf32>
    %477 = arith.addf %474, %476 : vector<2x128xf32>
    %478 = vector.broadcast %41 : f32 to vector<2x128xf32>
    %479 = arith.mulf %89, %478 : vector<2x128xf32>
    %480 = arith.addf %477, %479 : vector<2x128xf32>
    %481 = vector.broadcast %45 : f32 to vector<2x128xf32>
    %482 = arith.mulf %91, %481 : vector<2x128xf32>
    %483 = arith.addf %480, %482 : vector<2x128xf32>
    %484 = vector.broadcast %49 : f32 to vector<2x128xf32>
    %485 = arith.addf %483, %484 : vector<2x128xf32>
    %486 = vector.broadcast %2 : f32 to vector<2x128xf32>
    %487 = arith.mulf %69, %486 : vector<2x128xf32>
    %488 = vector.broadcast %6 : f32 to vector<2x128xf32>
    %489 = arith.mulf %71, %488 : vector<2x128xf32>
    %490 = arith.addf %487, %489 : vector<2x128xf32>
    %491 = vector.broadcast %10 : f32 to vector<2x128xf32>
    %492 = arith.mulf %73, %491 : vector<2x128xf32>
    %493 = arith.addf %490, %492 : vector<2x128xf32>
    %494 = vector.broadcast %14 : f32 to vector<2x128xf32>
    %495 = arith.mulf %75, %494 : vector<2x128xf32>
    %496 = arith.addf %493, %495 : vector<2x128xf32>
    %497 = vector.broadcast %18 : f32 to vector<2x128xf32>
    %498 = arith.mulf %77, %497 : vector<2x128xf32>
    %499 = arith.addf %496, %498 : vector<2x128xf32>
    %500 = vector.broadcast %22 : f32 to vector<2x128xf32>
    %501 = arith.mulf %79, %500 : vector<2x128xf32>
    %502 = arith.addf %499, %501 : vector<2x128xf32>
    %503 = vector.broadcast %26 : f32 to vector<2x128xf32>
    %504 = arith.mulf %81, %503 : vector<2x128xf32>
    %505 = arith.addf %502, %504 : vector<2x128xf32>
    %506 = vector.broadcast %30 : f32 to vector<2x128xf32>
    %507 = arith.mulf %83, %506 : vector<2x128xf32>
    %508 = arith.addf %505, %507 : vector<2x128xf32>
    %509 = vector.broadcast %34 : f32 to vector<2x128xf32>
    %510 = arith.mulf %85, %509 : vector<2x128xf32>
    %511 = arith.addf %508, %510 : vector<2x128xf32>
    %512 = vector.broadcast %38 : f32 to vector<2x128xf32>
    %513 = arith.mulf %87, %512 : vector<2x128xf32>
    %514 = arith.addf %511, %513 : vector<2x128xf32>
    %515 = vector.broadcast %42 : f32 to vector<2x128xf32>
    %516 = arith.mulf %89, %515 : vector<2x128xf32>
    %517 = arith.addf %514, %516 : vector<2x128xf32>
    %518 = vector.broadcast %46 : f32 to vector<2x128xf32>
    %519 = arith.mulf %91, %518 : vector<2x128xf32>
    %520 = arith.addf %517, %519 : vector<2x128xf32>
    %521 = vector.broadcast %50 : f32 to vector<2x128xf32>
    %522 = arith.addf %520, %521 : vector<2x128xf32>
    %523 = vector.broadcast %3 : f32 to vector<2x128xf32>
    %524 = arith.mulf %69, %523 : vector<2x128xf32>
    %525 = vector.broadcast %7 : f32 to vector<2x128xf32>
    %526 = arith.mulf %71, %525 : vector<2x128xf32>
    %527 = arith.addf %524, %526 : vector<2x128xf32>
    %528 = vector.broadcast %11 : f32 to vector<2x128xf32>
    %529 = arith.mulf %73, %528 : vector<2x128xf32>
    %530 = arith.addf %527, %529 : vector<2x128xf32>
    %531 = vector.broadcast %15 : f32 to vector<2x128xf32>
    %532 = arith.mulf %75, %531 : vector<2x128xf32>
    %533 = arith.addf %530, %532 : vector<2x128xf32>
    %534 = vector.broadcast %19 : f32 to vector<2x128xf32>
    %535 = arith.mulf %77, %534 : vector<2x128xf32>
    %536 = arith.addf %533, %535 : vector<2x128xf32>
    %537 = vector.broadcast %23 : f32 to vector<2x128xf32>
    %538 = arith.mulf %79, %537 : vector<2x128xf32>
    %539 = arith.addf %536, %538 : vector<2x128xf32>
    %540 = vector.broadcast %27 : f32 to vector<2x128xf32>
    %541 = arith.mulf %81, %540 : vector<2x128xf32>
    %542 = arith.addf %539, %541 : vector<2x128xf32>
    %543 = vector.broadcast %31 : f32 to vector<2x128xf32>
    %544 = arith.mulf %83, %543 : vector<2x128xf32>
    %545 = arith.addf %542, %544 : vector<2x128xf32>
    %546 = vector.broadcast %35 : f32 to vector<2x128xf32>
    %547 = arith.mulf %85, %546 : vector<2x128xf32>
    %548 = arith.addf %545, %547 : vector<2x128xf32>
    %549 = vector.broadcast %39 : f32 to vector<2x128xf32>
    %550 = arith.mulf %87, %549 : vector<2x128xf32>
    %551 = arith.addf %548, %550 : vector<2x128xf32>
    %552 = vector.broadcast %43 : f32 to vector<2x128xf32>
    %553 = arith.mulf %89, %552 : vector<2x128xf32>
    %554 = arith.addf %551, %553 : vector<2x128xf32>
    %555 = vector.broadcast %47 : f32 to vector<2x128xf32>
    %556 = arith.mulf %91, %555 : vector<2x128xf32>
    %557 = arith.addf %554, %556 : vector<2x128xf32>
    %558 = vector.broadcast %51 : f32 to vector<2x128xf32>
    %559 = arith.addf %557, %558 : vector<2x128xf32>
    %c0_220 = arith.constant 0 : index
    %c0_221 = arith.constant 0 : index
    %c0_222 = arith.constant 0 : index
    %c0_223 = arith.constant 0 : index
    %560 = vector.load %arg7[%c0_220, %c0_221, %c0_222, %c0_223] : memref<1x4x2x128xf32, #tpu.memory_space<vmem>>, vector<1x1x2x128xf32>
    %561 = vector.shape_cast %560 : vector<1x1x2x128xf32> to vector<2x128xf32>
    %562 = vector.shape_cast %448 : vector<2x128xf32> to vector<1x1x2x128xf32>
    tpu.vector_store %arg7[%c0_220, %c0_221, %c0_222, %c0_223], %562 {strides = array<i32>} : memref<1x4x2x128xf32, #tpu.memory_space<vmem>>, vector<1x1x2x128xf32>,
    %c0_224 = arith.constant 0 : index
    %c1_225 = arith.constant 1 : index
    %c0_226 = arith.constant 0 : index
    %c0_227 = arith.constant 0 : index
    %563 = vector.load %arg7[%c0_224, %c1_225, %c0_226, %c0_227] : memref<1x4x2x128xf32, #tpu.memory_space<vmem>>, vector<1x1x2x128xf32>
    %564 = vector.shape_cast %563 : vector<1x1x2x128xf32> to vector<2x128xf32>
    %565 = vector.shape_cast %485 : vector<2x128xf32> to vector<1x1x2x128xf32>
    tpu.vector_store %arg7[%c0_224, %c1_225, %c0_226, %c0_227], %565 {strides = array<i32>} : memref<1x4x2x128xf32, #tpu.memory_space<vmem>>, vector<1x1x2x128xf32>,
    %c0_228 = arith.constant 0 : index
    %c2_229 = arith.constant 2 : index
    %c0_230 = arith.constant 0 : index
    %c0_231 = arith.constant 0 : index
    %566 = vector.load %arg7[%c0_228, %c2_229, %c0_230, %c0_231] : memref<1x4x2x128xf32, #tpu.memory_space<vmem>>, vector<1x1x2x128xf32>
    %567 = vector.shape_cast %566 : vector<1x1x2x128xf32> to vector<2x128xf32>
    %568 = vector.shape_cast %522 : vector<2x128xf32> to vector<1x1x2x128xf32>
    tpu.vector_store %arg7[%c0_228, %c2_229, %c0_230, %c0_231], %568 {strides = array<i32>} : memref<1x4x2x128xf32, #tpu.memory_space<vmem>>, vector<1x1x2x128xf32>,
    %c0_232 = arith.constant 0 : index
    %c3_233 = arith.constant 3 : index
    %c0_234 = arith.constant 0 : index
    %c0_235 = arith.constant 0 : index
    %569 = vector.load %arg7[%c0_232, %c3_233, %c0_234, %c0_235] : memref<1x4x2x128xf32, #tpu.memory_space<vmem>>, vector<1x1x2x128xf32>
    %570 = vector.shape_cast %569 : vector<1x1x2x128xf32> to vector<2x128xf32>
    %571 = vector.shape_cast %559 : vector<2x128xf32> to vector<1x1x2x128xf32>
    tpu.vector_store %arg7[%c0_232, %c3_233, %c0_234, %c0_235], %571 {strides = array<i32>} : memref<1x4x2x128xf32, #tpu.memory_space<vmem>>, vector<1x1x2x128xf32>,
    %572 = vector.broadcast %0 : f32 to vector<2x128xf32>
    %573 = arith.mulf %128, %572 : vector<2x128xf32>
    %574 = vector.broadcast %4 : f32 to vector<2x128xf32>
    %575 = arith.mulf %165, %574 : vector<2x128xf32>
    %576 = arith.addf %573, %575 : vector<2x128xf32>
    %577 = vector.broadcast %8 : f32 to vector<2x128xf32>
    %578 = arith.mulf %202, %577 : vector<2x128xf32>
    %579 = arith.addf %576, %578 : vector<2x128xf32>
    %580 = vector.broadcast %12 : f32 to vector<2x128xf32>
    %581 = arith.mulf %239, %580 : vector<2x128xf32>
    %582 = arith.addf %579, %581 : vector<2x128xf32>
    %583 = vector.broadcast %16 : f32 to vector<2x128xf32>
    %584 = arith.mulf %288, %583 : vector<2x128xf32>
    %585 = arith.addf %582, %584 : vector<2x128xf32>
    %586 = vector.broadcast %20 : f32 to vector<2x128xf32>
    %587 = arith.mulf %325, %586 : vector<2x128xf32>
    %588 = arith.addf %585, %587 : vector<2x128xf32>
    %589 = vector.broadcast %24 : f32 to vector<2x128xf32>
    %590 = arith.mulf %362, %589 : vector<2x128xf32>
    %591 = arith.addf %588, %590 : vector<2x128xf32>
    %592 = vector.broadcast %28 : f32 to vector<2x128xf32>
    %593 = arith.mulf %399, %592 : vector<2x128xf32>
    %594 = arith.addf %591, %593 : vector<2x128xf32>
    %595 = vector.broadcast %32 : f32 to vector<2x128xf32>
    %596 = arith.mulf %448, %595 : vector<2x128xf32>
    %597 = arith.addf %594, %596 : vector<2x128xf32>
    %598 = vector.broadcast %36 : f32 to vector<2x128xf32>
    %599 = arith.mulf %485, %598 : vector<2x128xf32>
    %600 = arith.addf %597, %599 : vector<2x128xf32>
    %601 = vector.broadcast %40 : f32 to vector<2x128xf32>
    %602 = arith.mulf %522, %601 : vector<2x128xf32>
    %603 = arith.addf %600, %602 : vector<2x128xf32>
    %604 = vector.broadcast %44 : f32 to vector<2x128xf32>
    %605 = arith.mulf %559, %604 : vector<2x128xf32>
    %606 = arith.addf %603, %605 : vector<2x128xf32>
    %607 = vector.broadcast %48 : f32 to vector<2x128xf32>
    %608 = arith.addf %606, %607 : vector<2x128xf32>
    %609 = vector.broadcast %1 : f32 to vector<2x128xf32>
    %610 = arith.mulf %128, %609 : vector<2x128xf32>
    %611 = vector.broadcast %5 : f32 to vector<2x128xf32>
    %612 = arith.mulf %165, %611 : vector<2x128xf32>
    %613 = arith.addf %610, %612 : vector<2x128xf32>
    %614 = vector.broadcast %9 : f32 to vector<2x128xf32>
    %615 = arith.mulf %202, %614 : vector<2x128xf32>
    %616 = arith.addf %613, %615 : vector<2x128xf32>
    %617 = vector.broadcast %13 : f32 to vector<2x128xf32>
    %618 = arith.mulf %239, %617 : vector<2x128xf32>
    %619 = arith.addf %616, %618 : vector<2x128xf32>
    %620 = vector.broadcast %17 : f32 to vector<2x128xf32>
    %621 = arith.mulf %288, %620 : vector<2x128xf32>
    %622 = arith.addf %619, %621 : vector<2x128xf32>
    %623 = vector.broadcast %21 : f32 to vector<2x128xf32>
    %624 = arith.mulf %325, %623 : vector<2x128xf32>
    %625 = arith.addf %622, %624 : vector<2x128xf32>
    %626 = vector.broadcast %25 : f32 to vector<2x128xf32>
    %627 = arith.mulf %362, %626 : vector<2x128xf32>
    %628 = arith.addf %625, %627 : vector<2x128xf32>
    %629 = vector.broadcast %29 : f32 to vector<2x128xf32>
    %630 = arith.mulf %399, %629 : vector<2x128xf32>
    %631 = arith.addf %628, %630 : vector<2x128xf32>
    %632 = vector.broadcast %33 : f32 to vector<2x128xf32>
    %633 = arith.mulf %448, %632 : vector<2x128xf32>
    %634 = arith.addf %631, %633 : vector<2x128xf32>
    %635 = vector.broadcast %37 : f32 to vector<2x128xf32>
    %636 = arith.mulf %485, %635 : vector<2x128xf32>
    %637 = arith.addf %634, %636 : vector<2x128xf32>
    %638 = vector.broadcast %41 : f32 to vector<2x128xf32>
    %639 = arith.mulf %522, %638 : vector<2x128xf32>
    %640 = arith.addf %637, %639 : vector<2x128xf32>
    %641 = vector.broadcast %45 : f32 to vector<2x128xf32>
    %642 = arith.mulf %559, %641 : vector<2x128xf32>
    %643 = arith.addf %640, %642 : vector<2x128xf32>
    %644 = vector.broadcast %49 : f32 to vector<2x128xf32>
    %645 = arith.addf %643, %644 : vector<2x128xf32>
    %646 = vector.broadcast %2 : f32 to vector<2x128xf32>
    %647 = arith.mulf %128, %646 : vector<2x128xf32>
    %648 = vector.broadcast %6 : f32 to vector<2x128xf32>
    %649 = arith.mulf %165, %648 : vector<2x128xf32>
    %650 = arith.addf %647, %649 : vector<2x128xf32>
    %651 = vector.broadcast %10 : f32 to vector<2x128xf32>
    %652 = arith.mulf %202, %651 : vector<2x128xf32>
    %653 = arith.addf %650, %652 : vector<2x128xf32>
    %654 = vector.broadcast %14 : f32 to vector<2x128xf32>
    %655 = arith.mulf %239, %654 : vector<2x128xf32>
    %656 = arith.addf %653, %655 : vector<2x128xf32>
    %657 = vector.broadcast %18 : f32 to vector<2x128xf32>
    %658 = arith.mulf %288, %657 : vector<2x128xf32>
    %659 = arith.addf %656, %658 : vector<2x128xf32>
    %660 = vector.broadcast %22 : f32 to vector<2x128xf32>
    %661 = arith.mulf %325, %660 : vector<2x128xf32>
    %662 = arith.addf %659, %661 : vector<2x128xf32>
    %663 = vector.broadcast %26 : f32 to vector<2x128xf32>
    %664 = arith.mulf %362, %663 : vector<2x128xf32>
    %665 = arith.addf %662, %664 : vector<2x128xf32>
    %666 = vector.broadcast %30 : f32 to vector<2x128xf32>
    %667 = arith.mulf %399, %666 : vector<2x128xf32>
    %668 = arith.addf %665, %667 : vector<2x128xf32>
    %669 = vector.broadcast %34 : f32 to vector<2x128xf32>
    %670 = arith.mulf %448, %669 : vector<2x128xf32>
    %671 = arith.addf %668, %670 : vector<2x128xf32>
    %672 = vector.broadcast %38 : f32 to vector<2x128xf32>
    %673 = arith.mulf %485, %672 : vector<2x128xf32>
    %674 = arith.addf %671, %673 : vector<2x128xf32>
    %675 = vector.broadcast %42 : f32 to vector<2x128xf32>
    %676 = arith.mulf %522, %675 : vector<2x128xf32>
    %677 = arith.addf %674, %676 : vector<2x128xf32>
    %678 = vector.broadcast %46 : f32 to vector<2x128xf32>
    %679 = arith.mulf %559, %678 : vector<2x128xf32>
    %680 = arith.addf %677, %679 : vector<2x128xf32>
    %681 = vector.broadcast %50 : f32 to vector<2x128xf32>
    %682 = arith.addf %680, %681 : vector<2x128xf32>
    %683 = vector.broadcast %3 : f32 to vector<2x128xf32>
    %684 = arith.mulf %128, %683 : vector<2x128xf32>
    %685 = vector.broadcast %7 : f32 to vector<2x128xf32>
    %686 = arith.mulf %165, %685 : vector<2x128xf32>
    %687 = arith.addf %684, %686 : vector<2x128xf32>
    %688 = vector.broadcast %11 : f32 to vector<2x128xf32>
    %689 = arith.mulf %202, %688 : vector<2x128xf32>
    %690 = arith.addf %687, %689 : vector<2x128xf32>
    %691 = vector.broadcast %15 : f32 to vector<2x128xf32>
    %692 = arith.mulf %239, %691 : vector<2x128xf32>
    %693 = arith.addf %690, %692 : vector<2x128xf32>
    %694 = vector.broadcast %19 : f32 to vector<2x128xf32>
    %695 = arith.mulf %288, %694 : vector<2x128xf32>
    %696 = arith.addf %693, %695 : vector<2x128xf32>
    %697 = vector.broadcast %23 : f32 to vector<2x128xf32>
    %698 = arith.mulf %325, %697 : vector<2x128xf32>
    %699 = arith.addf %696, %698 : vector<2x128xf32>
    %700 = vector.broadcast %27 : f32 to vector<2x128xf32>
    %701 = arith.mulf %362, %700 : vector<2x128xf32>
    %702 = arith.addf %699, %701 : vector<2x128xf32>
    %703 = vector.broadcast %31 : f32 to vector<2x128xf32>
    %704 = arith.mulf %399, %703 : vector<2x128xf32>
    %705 = arith.addf %702, %704 : vector<2x128xf32>
    %706 = vector.broadcast %35 : f32 to vector<2x128xf32>
    %707 = arith.mulf %448, %706 : vector<2x128xf32>
    %708 = arith.addf %705, %707 : vector<2x128xf32>
    %709 = vector.broadcast %39 : f32 to vector<2x128xf32>
    %710 = arith.mulf %485, %709 : vector<2x128xf32>
    %711 = arith.addf %708, %710 : vector<2x128xf32>
    %712 = vector.broadcast %43 : f32 to vector<2x128xf32>
    %713 = arith.mulf %522, %712 : vector<2x128xf32>
    %714 = arith.addf %711, %713 : vector<2x128xf32>
    %715 = vector.broadcast %47 : f32 to vector<2x128xf32>
    %716 = arith.mulf %559, %715 : vector<2x128xf32>
    %717 = arith.addf %714, %716 : vector<2x128xf32>
    %718 = vector.broadcast %51 : f32 to vector<2x128xf32>
    %719 = arith.addf %717, %718 : vector<2x128xf32>
    %c0_236 = arith.constant 0 : index
    %c0_237 = arith.constant 0 : index
    %c0_238 = arith.constant 0 : index
    %c0_239 = arith.constant 0 : index
    %720 = vector.load %arg8[%c0_236, %c0_237, %c0_238, %c0_239] : memref<1x4x2x128xf32, #tpu.memory_space<vmem>>, vector<1x1x2x128xf32>
    %721 = vector.shape_cast %720 : vector<1x1x2x128xf32> to vector<2x128xf32>
    %722 = vector.shape_cast %608 : vector<2x128xf32> to vector<1x1x2x128xf32>
    tpu.vector_store %arg8[%c0_236, %c0_237, %c0_238, %c0_239], %722 {strides = array<i32>} : memref<1x4x2x128xf32, #tpu.memory_space<vmem>>, vector<1x1x2x128xf32>,
    %c0_240 = arith.constant 0 : index
    %c1_241 = arith.constant 1 : index
    %c0_242 = arith.constant 0 : index
    %c0_243 = arith.constant 0 : index
    %723 = vector.load %arg8[%c0_240, %c1_241, %c0_242, %c0_243] : memref<1x4x2x128xf32, #tpu.memory_space<vmem>>, vector<1x1x2x128xf32>
    %724 = vector.shape_cast %723 : vector<1x1x2x128xf32> to vector<2x128xf32>
    %725 = vector.shape_cast %645 : vector<2x128xf32> to vector<1x1x2x128xf32>
    tpu.vector_store %arg8[%c0_240, %c1_241, %c0_242, %c0_243], %725 {strides = array<i32>} : memref<1x4x2x128xf32, #tpu.memory_space<vmem>>, vector<1x1x2x128xf32>,
    %c0_244 = arith.constant 0 : index
    %c2_245 = arith.constant 2 : index
    %c0_246 = arith.constant 0 : index
    %c0_247 = arith.constant 0 : index
    %726 = vector.load %arg8[%c0_244, %c2_245, %c0_246, %c0_247] : memref<1x4x2x128xf32, #tpu.memory_space<vmem>>, vector<1x1x2x128xf32>
    %727 = vector.shape_cast %726 : vector<1x1x2x128xf32> to vector<2x128xf32>
    %728 = vector.shape_cast %682 : vector<2x128xf32> to vector<1x1x2x128xf32>
    tpu.vector_store %arg8[%c0_244, %c2_245, %c0_246, %c0_247], %728 {strides = array<i32>} : memref<1x4x2x128xf32, #tpu.memory_space<vmem>>, vector<1x1x2x128xf32>,
    %c0_248 = arith.constant 0 : index
    %c3_249 = arith.constant 3 : index
    %c0_250 = arith.constant 0 : index
    %c0_251 = arith.constant 0 : index
    %729 = vector.load %arg8[%c0_248, %c3_249, %c0_250, %c0_251] : memref<1x4x2x128xf32, #tpu.memory_space<vmem>>, vector<1x1x2x128xf32>
    %730 = vector.shape_cast %729 : vector<1x1x2x128xf32> to vector<2x128xf32>
    %731 = vector.shape_cast %719 : vector<2x128xf32> to vector<1x1x2x128xf32>
    tpu.vector_store %arg8[%c0_248, %c3_249, %c0_250, %c0_251], %731 {strides = array<i32>} : memref<1x4x2x128xf32, #tpu.memory_space<vmem>>, vector<1x1x2x128xf32>,
    return
  }
  func.func @transform_0(%arg0: i32, %arg1: i32) -> (i32, i32) {
    %c0_i32 = arith.constant 0 : i32
    %c0_i32_0 = arith.constant 0 : i32
    %c0_i32_1 = arith.constant 0 : i32
    return %c0_i32, %c0_i32_0 : i32, i32
  }
  func.func @transform_1(%arg0: i32, %arg1: i32) -> i32 {
    %c0_i32 = arith.constant 0 : i32
    %c0_i32_0 = arith.constant 0 : i32
    return %c0_i32 : i32
  }
  func.func @transform_2(%arg0: i32, %arg1: i32) -> (i32, i32, i32, i32, i32) {
    %c0_i32 = arith.constant 0 : i32
    %c0_i32_0 = arith.constant 0 : i32
    %c0_i32_1 = arith.constant 0 : i32
    %c0_i32_2 = arith.constant 0 : i32
    return %arg0, %c0_i32, %c0_i32_0, %arg1, %c0_i32_1 : i32, i32, i32, i32, i32
  }
  func.func @transform_3(%arg0: i32, %arg1: i32) -> (i32, i32, i32, i32) {
    %c0_i32 = arith.constant 0 : i32
    %c0_i32_0 = arith.constant 0 : i32
    %c0_i32_1 = arith.constant 0 : i32
    return %arg0, %c0_i32, %arg1, %c0_i32_0 : i32, i32, i32, i32
  }
  func.func @transform_4(%arg0: i32, %arg1: i32) -> (i32, i32, i32, i32) {
    %c0_i32 = arith.constant 0 : i32
    %c0_i32_0 = arith.constant 0 : i32
    %c0_i32_1 = arith.constant 0 : i32
    return %arg0, %c0_i32, %arg1, %c0_i32_0 : i32, i32, i32, i32
  }
  func.func @transform_5(%arg0: i32, %arg1: i32) -> (i32, i32, i32, i32) {
    %c0_i32 = arith.constant 0 : i32
    %c0_i32_0 = arith.constant 0 : i32
    %c0_i32_1 = arith.constant 0 : i32
    return %arg0, %c0_i32, %arg1, %c0_i32_0 : i32, i32, i32, i32
  }
  func.func @transform_6(%arg0: i32, %arg1: i32) -> (i32, i32, i32, i32) {
    %c0_i32 = arith.constant 0 : i32
    %c0_i32_0 = arith.constant 0 : i32
    %c0_i32_1 = arith.constant 0 : i32
    return %arg0, %c0_i32, %arg1, %c0_i32_0 : i32, i32, i32, i32
  }
}

</mosaic_0001>

<llo_original>
// kernel: _lambda_.1
$region0: #{_lambda_.1}
  #allocation0 [shape = 'u32[]', space=smem, size = 0x4, offset = 0x4, fixed_abs, tag = 'smem constant byte address 0x4 - core index']
  #allocation1 [shape = 'u32[72,128]{1,0:T(1,128)}', space=vmem, size = 0x9000, scoped, tag = 'internal scratch']
  %s0 = inlined_call_operand.vmem [shape: f32[12,4], index: 0, kind: input, shape index: {}]
  %s1 = inlined_call_operand.vmem [shape: f32[4], index: 1, kind: input, shape index: {}]
  %s2 = inlined_call_operand.vmem [shape: f32[2,5,4,2,128], index: 2, kind: input, shape index: {}]
  %s3 = inlined_call_operand.vmem [shape: f32[2,4,2,128], index: 3, kind: output, shape index: {0}]
  %s4 = inlined_call_operand.vmem [shape: f32[2,4,2,128], index: 4, kind: output, shape index: {1}]
  %s5 = inlined_call_operand.vmem [shape: f32[2,4,2,128], index: 5, kind: output, shape index: {2}]
  %s6 = inlined_call_operand.vmem [shape: f32[2,4,2,128], index: 6, kind: output, shape index: {3}]
  %7 = xla_tuple %s3, %s4, %s5, %s6
  %s8 = sld [smem:[#allocation0]]
  $region77: #{_lambda_.1} parent=0
    _
  %s10 = ssub.s32 1, %s8
  %s11 = scalar_select 0, %s10, %s8
  $region1: #{_lambda_.1} parent=0
    #allocation2 [shape = 'u8[8192]{0}', space=smem, size = 0x2000, scoped, tag = 'input window, operand 0, single buffered']
    #allocation3 [shape = 's32[2]{0}', space=sflag, size = 0x8, scoped, tag = 'scoped memory for _lambda_.1']
    #allocation4 [shape = 'u8[512]{0}', space=smem, size = 0x200, scoped, tag = 'input window, operand 1, single buffered']
    #allocation5 [shape = 's32[1]{0}', space=sflag, size = 0x4, scoped, tag = 'scoped memory for _lambda_.1']
    %12 = vsyncpa [#allocation3], 0
    %13 = vsyncpa [#allocation5], 0
    loop: start=0, step=1, limit=4
    $region2: #{_lambda_.1} parent=1 // loop_pre_header
      _
    $region3: #{_lambda_.1} parent=1 // loop_header
      %s15 = sphi 0, %s19
      %p16 = scmp.ge.s32.totalorder %s15, 4
      %s22 = sphi 0, %s34
      %s23 = sphi 0, %s30
      %s24 = sphi 0, %s22
      %s25 = sphi 0, %s23
      %s26 = sphi 0, %s24
      %s27 = sphi 0, %s25
      %s35 = sphi 0, %s35
      %s37 = sphi 0, %s35
      %s38 = sphi 0, %s37
      %s52 = sphi 0, %s38
      %s56 = sphi 0, %s56
      %s58 = sphi 0, %s56
      %s59 = sphi 0, %s58
      %s73 = sphi 0, %s59
      %s81 = sphi 0, %s83
      %s84 = sphi 0, %s81
      %s85 = sphi 0, %s84
      %s101 = sphi 0, %s85
      %s109 = sphi 0, %s111
      %s112 = sphi 0, %s109
      %s113 = sphi 0, %s112
      %s129 = sphi 0, %s113
      %s137 = sphi 0, %s139
      %s140 = sphi 0, %s137
      %s141 = sphi 0, %s140
      %s157 = sphi 0, %s141
      %s165 = sphi 0, %s167
      %s168 = sphi 0, %s165
      %s169 = sphi 0, %s168
      %s185 = sphi 0, %s169
      %s193 = sphi 0, %s195
      %s196 = sphi 0, %s193
      %s197 = sphi 0, %s196
      %s213 = sphi 0, %s197
    $region4: #{_lambda_.1} parent=1 // loop_header_branch
      %18 = sbr.rel (%p16) target = $region8
    $region5: #{_lambda_.1} parent=1 // loop_body
      %s20 = ssub.s32 %s15, 1
      %s21 = ssub.s32 %s15, 2
      %s28 = sadd.s32 1, %s23
      %p29 = scmp.ge.s32.totalorder %s28, 1
      %s30 = scalar_select %p29, 0, %s28
      %s31 = sadd.s32 1, %s22
      %s32 = scalar_select %p29, %s31, %s22
      %p33 = scmp.ge.s32.totalorder %s32, 2
      %s34 = scalar_select %p33, 0, %s32
      %s36 = sadd.s32 %s35, 1
      %p39 = scmp.eq.s32.totalorder %s15, 1
      %p40 = scmp.ne.s32.totalorder %s35, %s37
      %p41 = scmp.eq.s32.totalorder %s15, 0
      %p42 = por %p40, %p41
      %p43 = scmp.ne.s32.totalorder %s35, %s37
      %p44 = scmp.eq.s32.totalorder %s20, 1
      %p45 = por %p43, %p44
      %p46 = scmp.ne.s32.totalorder %s37, %s38
      %p47 = scmp.eq.s32.totalorder %s20, 0
      %p48 = por %p46, %p47
      %p49 = scmp.ne.s32.totalorder %s37, %s38
      %p50 = scmp.eq.s32.totalorder %s21, 1
      %p51 = por %p49, %p50
      %p53 = scmp.ne.s32.totalorder %s38, %s52
      %p54 = scmp.eq.s32.totalorder %s21, 0
      %p55 = por %p53, %p54
      %s57 = sadd.s32 %s56, 1
      %p60 = scmp.eq.s32.totalorder %s15, 1
      %p61 = scmp.ne.s32.totalorder %s56, %s58
      %p62 = scmp.eq.s32.totalorder %s15, 0
      %p63 = por %p61, %p62
      %p64 = scmp.ne.s32.totalorder %s56, %s58
      %p65 = scmp.eq.s32.totalorder %s20, 1
      %p66 = por %p64, %p65
      %p67 = scmp.ne.s32.totalorder %s58, %s59
      %p68 = scmp.eq.s32.totalorder %s20, 0
      %p69 = por %p67, %p68
      %p70 = scmp.ne.s32.totalorder %s58, %s59
      %p71 = scmp.eq.s32.totalorder %s21, 1
      %p72 = por %p70, %p71
      %p74 = scmp.ne.s32.totalorder %s59, %s73
      %p75 = scmp.eq.s32.totalorder %s21, 0
      %p76 = por %p74, %p75
      %s77 = ssub.s32 %s22, %s34
      %s78 = ssub.s32 %s23, %s30
      %s79 = sor.u32 %s77, %s78
      %p80 = scmp.eq.s32.totalorder %s79, 0
      %s82 = sadd.s32 %s81, 1
      %s83 = scalar_select %p80, %s81, %s82
      %p86 = pneg %p80
      %p87 = scmp.eq.s32.totalorder %s15, 1
      %p88 = por %p86, %p87
      %p89 = scmp.ne.s32.totalorder %s81, %s84
      %p90 = scmp.eq.s32.totalorder %s15, 0
      %p91 = por %p89, %p90
      %p92 = scmp.ne.s32.totalorder %s81, %s84
      %p93 = scmp.eq.s32.totalorder %s20, 1
      %p94 = por %p92, %p93
      %p95 = scmp.ne.s32.totalorder %s84, %s85
      %p96 = scmp.eq.s32.totalorder %s20, 0
      %p97 = por %p95, %p96
      %p98 = scmp.ne.s32.totalorder %s84, %s85
      %p99 = scmp.eq.s32.totalorder %s21, 1
      %p100 = por %p98, %p99
      %p102 = scmp.ne.s32.totalorder %s85, %s101
      %p103 = scmp.eq.s32.totalorder %s21, 0
      %p104 = por %p102, %p103
      %s105 = ssub.s32 %s22, %s34
      %s106 = ssub.s32 %s23, %s30
      %s107 = sor.u32 %s105, %s106
      %p108 = scmp.eq.s32.totalorder %s107, 0
      %s110 = sadd.s32 %s109, 1
      %s111 = scalar_select %p108, %s109, %s110
      %p114 = pneg %p108
      %p115 = scmp.eq.s32.totalorder %s15, 1
      %p116 = por %p114, %p115
      %p117 = scmp.ne.s32.totalorder %s109, %s112
      %p118 = scmp.eq.s32.totalorder %s15, 0
      %p119 = por %p117, %p118
      %p120 = scmp.ne.s32.totalorder %s109, %s112
      %p121 = scmp.eq.s32.totalorder %s20, 1
      %p122 = por %p120, %p121
      %p123 = scmp.ne.s32.totalorder %s112, %s113
      %p124 = scmp.eq.s32.totalorder %s20, 0
      %p125 = por %p123, %p124
      %p126 = scmp.ne.s32.totalorder %s112, %s113
      %p127 = scmp.eq.s32.totalorder %s21, 1
      %p128 = por %p126, %p127
      %p130 = scmp.ne.s32.totalorder %s113, %s129
      %p131 = scmp.eq.s32.totalorder %s21, 0
      %p132 = por %p130, %p131
      %s133 = ssub.s32 %s22, %s34
      %s134 = ssub.s32 %s23, %s30
      %s135 = sor.u32 %s133, %s134
      %p136 = scmp.eq.s32.totalorder %s135, 0
      %s138 = sadd.s32 %s137, 1
      %s139 = scalar_select %p136, %s137, %s138
      %p142 = pneg %p136
      %p143 = scmp.eq.s32.totalorder %s15, 1
      %p144 = por %p142, %p143
      %p145 = scmp.ne.s32.totalorder %s137, %s140
      %p146 = scmp.eq.s32.totalorder %s15, 0
      %p147 = por %p145, %p146
      %p148 = scmp.ne.s32.totalorder %s137, %s140
      %p149 = scmp.eq.s32.totalorder %s20, 1
      %p150 = por %p148, %p149
      %p151 = scmp.ne.s32.totalorder %s140, %s141
      %p152 = scmp.eq.s32.totalorder %s20, 0
      %p153 = por %p151, %p152
      %p154 = scmp.ne.s32.totalorder %s140, %s141
      %p155 = scmp.eq.s32.totalorder %s21, 1
      %p156 = por %p154, %p155
      %p158 = scmp.ne.s32.totalorder %s141, %s157
      %p159 = scmp.eq.s32.totalorder %s21, 0
      %p160 = por %p158, %p159
      %s161 = ssub.s32 %s22, %s34
      %s162 = ssub.s32 %s23, %s30
      %s163 = sor.u32 %s161, %s162
      %p164 = scmp.eq.s32.totalorder %s163, 0
      %s166 = sadd.s32 %s165, 1
      %s167 = scalar_select %p164, %s165, %s166
      %p170 = pneg %p164
      %p171 = scmp.eq.s32.totalorder %s15, 1
      %p172 = por %p170, %p171
      %p173 = scmp.ne.s32.totalorder %s165, %s168
      %p174 = scmp.eq.s32.totalorder %s15, 0
      %p175 = por %p173, %p174
      %p176 = scmp.ne.s32.totalorder %s165, %s168
      %p177 = scmp.eq.s32.totalorder %s20, 1
      %p178 = por %p176, %p177
      %p179 = scmp.ne.s32.totalorder %s168, %s169
      %p180 = scmp.eq.s32.totalorder %s20, 0
      %p181 = por %p179, %p180
      %p182 = scmp.ne.s32.totalorder %s168, %s169
      %p183 = scmp.eq.s32.totalorder %s21, 1
      %p184 = por %p182, %p183
      %p186 = scmp.ne.s32.totalorder %s169, %s185
      %p187 = scmp.eq.s32.totalorder %s21, 0
      %p188 = por %p186, %p187
      %s189 = ssub.s32 %s22, %s34
      %s190 = ssub.s32 %s23, %s30
      %s191 = sor.u32 %s189, %s190
      %p192 = scmp.eq.s32.totalorder %s191, 0
      %s194 = sadd.s32 %s193, 1
      %s195 = scalar_select %p192, %s193, %s194
      %p198 = pneg %p192
      %p199 = scmp.eq.s32.totalorder %s15, 1
      %p200 = por %p198, %p199
      %p201 = scmp.ne.s32.totalorder %s193, %s196
      %p202 = scmp.eq.s32.totalorder %s15, 0
      %p203 = por %p201, %p202
      %p204 = scmp.ne.s32.totalorder %s193, %s196
      %p205 = scmp.eq.s32.totalorder %s20, 1
      %p206 = por %p204, %p205
      %p207 = scmp.ne.s32.totalorder %s196, %s197
      %p208 = scmp.eq.s32.totalorder %s20, 0
      %p209 = por %p207, %p208
      %p210 = scmp.ne.s32.totalorder %s196, %s197
      %p211 = scmp.eq.s32.totalorder %s21, 1
      %p212 = por %p210, %p211
      %p214 = scmp.ne.s32.totalorder %s197, %s213
      %p215 = scmp.eq.s32.totalorder %s21, 0
      %p216 = por %p214, %p215
      %p217 = scmp.le.s32.totalorder 1, %s15
      %p218 = scmp.lt.s32.totalorder %s15, 3
      %p219 = pnand %p217, %p218
      %p220 = pneg %p219
      // Predicated region
      $region9: #{_lambda_.1} parent=5 // pred_check
        _
      $region10: #{_lambda_.1} parent=5 // pred_check_branch
        %222 = sbr.rel (%p219) target = $region12
      $region11: #{_lambda_.1} parent=5 // pred_region
        %s223 = ssub.s32 %s15, 1
        // Predicated region
        $region13: #{_lambda_.1} parent=11 // pred_check
          %p224 = pneg %p48
        $region14: #{_lambda_.1} parent=11 // pred_check_branch
          %226 = sbr.rel (%p224) target = $region16
        $region15: #{_lambda_.1} parent=11 // pred_region
          %228 = vsyncadd [#allocation3], 0
          %s229 = sshll.u32 %s0, 4
          %s230 = int_to_ptr.vmem [resolvable:$true] %s229
          %235 = dma.vmem_to_smem %s230, 256, [#allocation2], [#allocation3], 128, 128, 8
        $region16: #{_lambda_.1} parent=11 // pred_fallthru
          _
        // Predicated region
        $region17: #{_lambda_.1} parent=11 // pred_check
          %p236 = pneg %p69
        $region18: #{_lambda_.1} parent=11 // pred_check_branch
          %238 = sbr.rel (%p236) target = $region20
        $region19: #{_lambda_.1} parent=11 // pred_region
          %240 = vsyncadd [#allocation5], 0
          %s242 = sshll.u32 %s1, 4
          %s243 = int_to_ptr.vmem [resolvable:$true] %s242
          %245 = dma.vmem_to_smem %s243, 16, [#allocation4], [#allocation5]
        $region20: #{_lambda_.1} parent=11 // pred_fallthru
          _
      $region12: #{_lambda_.1} parent=5 // pred_fallthru
        _
      %p246 = scmp.lt.s32.totalorder %s15, 2
      // Predicated region
      $region21: #{_lambda_.1} parent=5 // pred_check
        %p247 = pneg %p246
      $region22: #{_lambda_.1} parent=5 // pred_check_branch
        %249 = sbr.rel (%p247) target = $region24
      $region23: #{_lambda_.1} parent=5 // pred_region
        // Predicated region
        $region25: #{_lambda_.1} parent=23 // pred_check
          %p250 = pneg %p91
        $region26: #{_lambda_.1} parent=23 // pred_check_branch
          %252 = sbr.rel (%p250) target = $region28
        $region27: #{_lambda_.1} parent=23 // pred_region
          %p253 = scmp.lt.s32.totalorder %s22, 1
          %s254 = scalar_select %p253, %s22, 1
          %p255 = scmp.lt.s32.totalorder %s23, 0
          %s256 = scalar_select %p255, %s23, 0
          %s257 = smul.addr %s254, 20
          %s258 = sadd.s32 %s256, %s257
          %s259 = smul.addr %s258, 2
          %s260 = scalar_lea.vmem %s2, %s259
        $region28: #{_lambda_.1} parent=23 // pred_fallthru
          _
      $region24: #{_lambda_.1} parent=5 // pred_fallthru
        _
      %p261 = scmp.le.s32.totalorder 1, %s15
      %p262 = scmp.lt.s32.totalorder %s15, 3
      %p263 = pnand %p261, %p262
      %p264 = pneg %p263
      // Predicated region
      $region29: #{_lambda_.1} parent=5 // pred_check
        _
      $region30: #{_lambda_.1} parent=5 // pred_check_branch
        %266 = sbr.rel (%p263) target = $region32
      $region31: #{_lambda_.1} parent=5 // pred_region
        %s267 = ssub.s32 %s15, 1
        // Predicated region
        $region33: #{_lambda_.1} parent=31 // pred_check
          %p268 = pneg %p48
        $region34: #{_lambda_.1} parent=31 // pred_check_branch
          %270 = sbr.rel (%p268) target = $region36
        $region35: #{_lambda_.1} parent=31 // pred_region
          %272 = dma.done [#allocation3], 256
        $region36: #{_lambda_.1} parent=31 // pred_fallthru
          _
        // Predicated region
        $region37: #{_lambda_.1} parent=31 // pred_check
          %p273 = pneg %p69
        $region38: #{_lambda_.1} parent=31 // pred_check_branch
          %275 = sbr.rel (%p273) target = $region40
        $region39: #{_lambda_.1} parent=31 // pred_region
          %277 = dma.done [#allocation5], 16
        $region40: #{_lambda_.1} parent=31 // pred_fallthru
          _
        %278 = sfence
        %p279 = pneg %p48
        %p280 = pneg %p45
        %p281 = pneg %p69
        %p282 = pneg %p66
        %p283 = scmp.lt.s32.totalorder %s24, 1
        %s284 = scalar_select %p283, %s24, 1
        %p285 = scmp.lt.s32.totalorder %s25, 0
        %s286 = scalar_select %p285, %s25, 0
        %s287 = smul.addr %s284, 20
        %s288 = sadd.s32 %s286, %s287
        %s289 = smul.addr %s288, 2
        %s290 = scalar_lea.vmem %s2, %s289
        %p291 = pneg %p97
        %p292 = pneg %p94
        %p293 = pneg %p125
        %p294 = pneg %p122
        %p295 = scmp.lt.s32.totalorder %s24, 1
        %s296 = scalar_select %p295, %s24, 1
        %p297 = scmp.lt.s32.totalorder %s25, 0
        %s298 = scalar_select %p297, %s25, 0
        %s299 = smul.addr %s296, 4
        %s300 = sadd.s32 %s298, %s299
        %s301 = smul.addr %s300, 2
        %s302 = scalar_lea.vmem %s3, %s301
        %p303 = pneg %p153
        %p304 = pneg %p150
        %p305 = scmp.lt.s32.totalorder %s24, 1
        %s306 = scalar_select %p305, %s24, 1
        %p307 = scmp.lt.s32.totalorder %s25, 0
        %s308 = scalar_select %p307, %s25, 0
        %s309 = smul.addr %s306, 4
        %s310 = sadd.s32 %s308, %s309
        %s311 = smul.addr %s310, 2
        %s312 = scalar_lea.vmem %s4, %s311
        %p313 = pneg %p181
        %p314 = pneg %p178
        %p315 = scmp.lt.s32.totalorder %s24, 1
        %s316 = scalar_select %p315, %s24, 1
        %p317 = scmp.lt.s32.totalorder %s25, 0
        %s318 = scalar_select %p317, %s25, 0
        %s319 = smul.addr %s316, 4
        %s320 = sadd.s32 %s318, %s319
        %s321 = smul.addr %s320, 2
        %s322 = scalar_lea.vmem %s5, %s321
        %p323 = pneg %p209
        %p324 = pneg %p206
        %p325 = scmp.lt.s32.totalorder %s24, 1
        %s326 = scalar_select %p325, %s24, 1
        %p327 = scmp.lt.s32.totalorder %s25, 0
        %s328 = scalar_select %p327, %s25, 0
        %s329 = smul.addr %s326, 4
        %s330 = sadd.s32 %s328, %s329
        %s331 = smul.addr %s330, 2
        %s332 = scalar_lea.vmem %s6, %s331
        %p333 = scmp.lt.s32.totalorder %s24, 1
        %s334 = scalar_select %p333, %s24, 1
        %p335 = scmp.lt.s32.totalorder %s25, 0
        %s336 = scalar_select %p335, %s25, 0
        %s337 = smul.addr %s334, 20
        %s338 = sadd.s32 %s336, %s337
        %s339 = smul.addr %s338, 2
        %s340 = scalar_lea.vmem %s2, %s339
        %p341 = scmp.lt.s32.totalorder %s24, 1
        %s342 = scalar_select %p341, %s24, 1
        %p343 = scmp.lt.s32.totalorder %s25, 0
        %s344 = scalar_select %p343, %s25, 0
        %s345 = smul.addr %s342, 4
        %s346 = sadd.s32 %s344, %s345
        %s347 = smul.addr %s346, 2
        %s348 = scalar_lea.vmem %s3, %s347
        %p349 = scmp.lt.s32.totalorder %s24, 1
        %s350 = scalar_select %p349, %s24, 1
        %p351 = scmp.lt.s32.totalorder %s25, 0
        %s352 = scalar_select %p351, %s25, 0
        %s353 = smul.addr %s350, 4
        %s354 = sadd.s32 %s352, %s353
        %s355 = smul.addr %s354, 2
        %s356 = scalar_lea.vmem %s4, %s355
        %p357 = scmp.lt.s32.totalorder %s24, 1
        %s358 = scalar_select %p357, %s24, 1
        %p359 = scmp.lt.s32.totalorder %s25, 0
        %s360 = scalar_select %p359, %s25, 0
        %s361 = smul.addr %s358, 4
        %s362 = sadd.s32 %s360, %s361
        %s363 = smul.addr %s362, 2
        %s364 = scalar_lea.vmem %s5, %s363
        %p365 = scmp.lt.s32.totalorder %s24, 1
        %s366 = scalar_select %p365, %s24, 1
        %p367 = scmp.lt.s32.totalorder %s25, 0
        %s368 = scalar_select %p367, %s25, 0
        %s369 = smul.addr %s366, 4
        %s370 = sadd.s32 %s368, %s369
        %s371 = smul.addr %s370, 2
        %s372 = scalar_lea.vmem %s6, %s371
        %s373 = sld [smem:[#allocation2]]
        %s374 = sld [smem:[#allocation2 + $0x1]]
        %s375 = sld [smem:[#allocation2 + $0x2]]
        %s376 = sld [smem:[#allocation2 + $0x3]]
        %s377 = sld [smem:[#allocation2 + $0x80]]
        %s378 = sld [smem:[#allocation2 + $0x81]]
        %s379 = sld [smem:[#allocation2 + $0x82]]
        %s380 = sld [smem:[#allocation2 + $0x83]]
        %s381 = sld [smem:[#allocation2 + $0x100]]
        %s382 = sld [smem:[#allocation2 + $0x101]]
        %s383 = sld [smem:[#allocation2 + $0x102]]
        %s384 = sld [smem:[#allocation2 + $0x103]]
        %s385 = sld [smem:[#allocation2 + $0x180]]
        %s386 = sld [smem:[#allocation2 + $0x181]]
        %s387 = sld [smem:[#allocation2 + $0x182]]
        %s388 = sld [smem:[#allocation2 + $0x183]]
        %s389 = sld [smem:[#allocation2 + $0x200]]
        %s390 = sld [smem:[#allocation2 + $0x201]]
        %s391 = sld [smem:[#allocation2 + $0x202]]
        %s392 = sld [smem:[#allocation2 + $0x203]]
        %s393 = sld [smem:[#allocation2 + $0x280]]
        %s394 = sld [smem:[#allocation2 + $0x281]]
        %s395 = sld [smem:[#allocation2 + $0x282]]
        %s396 = sld [smem:[#allocation2 + $0x283]]
        %s397 = sld [smem:[#allocation2 + $0x300]]
        %s398 = sld [smem:[#allocation2 + $0x301]]
        %s399 = sld [smem:[#allocation2 + $0x302]]
        %s400 = sld [smem:[#allocation2 + $0x303]]
        %s401 = sld [smem:[#allocation2 + $0x380]]
        %s402 = sld [smem:[#allocation2 + $0x381]]
        %s403 = sld [smem:[#allocation2 + $0x382]]
        %s404 = sld [smem:[#allocation2 + $0x383]]
        %s405 = sld [smem:[#allocation2 + $0x400]]
        %s406 = sld [smem:[#allocation2 + $0x401]]
        %s407 = sld [smem:[#allocation2 + $0x402]]
        %s408 = sld [smem:[#allocation2 + $0x403]]
        %s409 = sld [smem:[#allocation2 + $0x480]]
        %s410 = sld [smem:[#allocation2 + $0x481]]
        %s411 = sld [smem:[#allocation2 + $0x482]]
        %s412 = sld [smem:[#allocation2 + $0x483]]
        %s413 = sld [smem:[#allocation2 + $0x500]]
        %s414 = sld [smem:[#allocation2 + $0x501]]
        %s415 = sld [smem:[#allocation2 + $0x502]]
        %s416 = sld [smem:[#allocation2 + $0x503]]
        %s417 = sld [smem:[#allocation2 + $0x580]]
        %s418 = sld [smem:[#allocation2 + $0x581]]
        %s419 = sld [smem:[#allocation2 + $0x582]]
        %s420 = sld [smem:[#allocation2 + $0x583]]
        %s421 = sld [smem:[#allocation4]]
        %s422 = sld [smem:[#allocation4 + $0x1]]
        %s423 = sld [smem:[#allocation4 + $0x2]]
        %s424 = sld [smem:[#allocation4 + $0x3]]
        %v425 = vld [vmem:[%s340] sm:$0x3]
        %s426 = scalar_lea.vmem %s340, 2
        %v427 = vld [vmem:[%s426] sm:$0x3]
        %s428 = scalar_lea.vmem %s340, 4
        %v429 = vld [vmem:[%s428] sm:$0x3]
        %s430 = scalar_lea.vmem %s340, 6
        %v431 = vld [vmem:[%s430] sm:$0x3]
        %s432 = scalar_lea.vmem %s340, 8
        %v433 = vld [vmem:[%s432] sm:$0x3]
        %s434 = scalar_lea.vmem %s340, 10
        %v435 = vld [vmem:[%s434] sm:$0x3]
        %s436 = scalar_lea.vmem %s340, 12
        %v437 = vld [vmem:[%s436] sm:$0x3]
        %s438 = scalar_lea.vmem %s340, 14
        %v439 = vld [vmem:[%s438] sm:$0x3]
        %s440 = scalar_lea.vmem %s340, 16
        %v441 = vld [vmem:[%s440] sm:$0x3]
        %s442 = scalar_lea.vmem %s340, 18
        %v443 = vld [vmem:[%s442] sm:$0x3]
        %s444 = scalar_lea.vmem %s340, 20
        %v445 = vld [vmem:[%s444] sm:$0x3]
        %s446 = scalar_lea.vmem %s340, 22
        %v447 = vld [vmem:[%s446] sm:$0x3]
        %s448 = scalar_lea.vmem %s340, 24
        %v449 = vld [vmem:[%s448] sm:$0x3]
        %s450 = scalar_lea.vmem %s340, 26
        %v451 = vld [vmem:[%s450] sm:$0x3]
        %s452 = scalar_lea.vmem %s340, 28
        %v453 = vld [vmem:[%s452] sm:$0x3]
        %s454 = scalar_lea.vmem %s340, 30
        %v455 = vld [vmem:[%s454] sm:$0x3]
        %s456 = scalar_lea.vmem %s340, 32
        %v457 = vld [vmem:[%s456] sm:$0x3]
        %s458 = scalar_lea.vmem %s340, 34
        %v459 = vld [vmem:[%s458] sm:$0x3]
        %s460 = scalar_lea.vmem %s340, 36
        %v461 = vld [vmem:[%s460] sm:$0x3]
        %s462 = scalar_lea.vmem %s340, 38
        %v463 = vld [vmem:[%s462] sm:$0x3]
        %v464 = vstv %s373
        %v465 = vmul.f32 %v425, %v464
        %v466 = vstv %s377
        %v467 = vmul.f32 %v427, %v466
        %v468 = vadd.f32 %v465, %v467
        %v469 = vstv %s381
        %v470 = vmul.f32 %v429, %v469
        %v471 = vadd.f32 %v468, %v470
        %v472 = vstv %s385
        %v473 = vmul.f32 %v431, %v472
        %v474 = vadd.f32 %v471, %v473
        %v475 = vstv %s389
        %v476 = vmul.f32 %v433, %v475
        %v477 = vadd.f32 %v474, %v476
        %v478 = vstv %s393
        %v479 = vmul.f32 %v435, %v478
        %v480 = vadd.f32 %v477, %v479
        %v481 = vstv %s397
        %v482 = vmul.f32 %v437, %v481
        %v483 = vadd.f32 %v480, %v482
        %v484 = vstv %s401
        %v485 = vmul.f32 %v439, %v484
        %v486 = vadd.f32 %v483, %v485
        %v487 = vstv %s405
        %v488 = vmul.f32 %v441, %v487
        %v489 = vadd.f32 %v486, %v488
        %v490 = vstv %s409
        %v491 = vmul.f32 %v443, %v490
        %v492 = vadd.f32 %v489, %v491
        %v493 = vstv %s413
        %v494 = vmul.f32 %v445, %v493
        %v495 = vadd.f32 %v492, %v494
        %v496 = vstv %s417
        %v497 = vmul.f32 %v447, %v496
        %v498 = vadd.f32 %v495, %v497
        %v499 = vstv %s421
        %v500 = vadd.f32 %v498, %v499
        %v501 = vstv %s374
        %v502 = vmul.f32 %v425, %v501
        %v503 = vstv %s378
        %v504 = vmul.f32 %v427, %v503
        %v505 = vadd.f32 %v502, %v504
        %v506 = vstv %s382
        %v507 = vmul.f32 %v429, %v506
        %v508 = vadd.f32 %v505, %v507
        %v509 = vstv %s386
        %v510 = vmul.f32 %v431, %v509
        %v511 = vadd.f32 %v508, %v510
        %v512 = vstv %s390
        %v513 = vmul.f32 %v433, %v512
        %v514 = vadd.f32 %v511, %v513
        %v515 = vstv %s394
        %v516 = vmul.f32 %v435, %v515
        %v517 = vadd.f32 %v514, %v516
        %v518 = vstv %s398
        %v519 = vmul.f32 %v437, %v518
        %v520 = vadd.f32 %v517, %v519
        %v521 = vstv %s402
        %v522 = vmul.f32 %v439, %v521
        %v523 = vadd.f32 %v520, %v522
        %v524 = vstv %s406
        %v525 = vmul.f32 %v441, %v524
        %v526 = vadd.f32 %v523, %v525
        %v527 = vstv %s410
        %v528 = vmul.f32 %v443, %v527
        %v529 = vadd.f32 %v526, %v528
        %v530 = vstv %s414
        %v531 = vmul.f32 %v445, %v530
        %v532 = vadd.f32 %v529, %v531
        %v533 = vstv %s418
        %v534 = vmul.f32 %v447, %v533
        %v535 = vadd.f32 %v532, %v534
        %v536 = vstv %s422
        %v537 = vadd.f32 %v535, %v536
        %v538 = vstv %s375
        %v539 = vmul.f32 %v425, %v538
        %v540 = vstv %s379
        %v541 = vmul.f32 %v427, %v540
        %v542 = vadd.f32 %v539, %v541
        %v543 = vstv %s383
        %v544 = vmul.f32 %v429, %v543
        %v545 = vadd.f32 %v542, %v544
        %v546 = vstv %s387
        %v547 = vmul.f32 %v431, %v546
        %v548 = vadd.f32 %v545, %v547
        %v549 = vstv %s391
        %v550 = vmul.f32 %v433, %v549
        %v551 = vadd.f32 %v548, %v550
        %v552 = vstv %s395
        %v553 = vmul.f32 %v435, %v552
        %v554 = vadd.f32 %v551, %v553
        %v555 = vstv %s399
        %v556 = vmul.f32 %v437, %v555
        %v557 = vadd.f32 %v554, %v556
        %v558 = vstv %s403
        %v559 = vmul.f32 %v439, %v558
        %v560 = vadd.f32 %v557, %v559
        %v561 = vstv %s407
        %v562 = vmul.f32 %v441, %v561
        %v563 = vadd.f32 %v560, %v562
        %v564 = vstv %s411
        %v565 = vmul.f32 %v443, %v564
        %v566 = vadd.f32 %v563, %v565
        %v567 = vstv %s415
        %v568 = vmul.f32 %v445, %v567
        %v569 = vadd.f32 %v566, %v568
        %v570 = vstv %s419
        %v571 = vmul.f32 %v447, %v570
        %v572 = vadd.f32 %v569, %v571
        %v573 = vstv %s423
        %v574 = vadd.f32 %v572, %v573
        %v575 = vstv %s376
        %v576 = vmul.f32 %v425, %v575
        %v577 = vstv %s380
        %v578 = vmul.f32 %v427, %v577
        %v579 = vadd.f32 %v576, %v578
        %v580 = vstv %s384
        %v581 = vmul.f32 %v429, %v580
        %v582 = vadd.f32 %v579, %v581
        %v583 = vstv %s388
        %v584 = vmul.f32 %v431, %v583
        %v585 = vadd.f32 %v582, %v584
        %v586 = vstv %s392
        %v587 = vmul.f32 %v433, %v586
        %v588 = vadd.f32 %v585, %v587
        %v589 = vstv %s396
        %v590 = vmul.f32 %v435, %v589
        %v591 = vadd.f32 %v588, %v590
        %v592 = vstv %s400
        %v593 = vmul.f32 %v437, %v592
        %v594 = vadd.f32 %v591, %v593
        %v595 = vstv %s404
        %v596 = vmul.f32 %v439, %v595
        %v597 = vadd.f32 %v594, %v596
        %v598 = vstv %s408
        %v599 = vmul.f32 %v441, %v598
        %v600 = vadd.f32 %v597, %v599
        %v601 = vstv %s412
        %v602 = vmul.f32 %v443, %v601
        %v603 = vadd.f32 %v600, %v602
        %v604 = vstv %s416
        %v605 = vmul.f32 %v445, %v604
        %v606 = vadd.f32 %v603, %v605
        %v607 = vstv %s420
        %v608 = vmul.f32 %v447, %v607
        %v609 = vadd.f32 %v606, %v608
        %v610 = vstv %s424
        %v611 = vadd.f32 %v609, %v610
        %612 = vst [vmem:[%s348] sm:$0x3] %v500
        %s613 = scalar_lea.vmem %s348, 2
        %614 = vst [vmem:[%s613] sm:$0x3] %v537
        %s615 = scalar_lea.vmem %s348, 4
        %616 = vst [vmem:[%s615] sm:$0x3] %v574
        %s617 = scalar_lea.vmem %s348, 6
        %618 = vst [vmem:[%s617] sm:$0x3] %v611
        %v619 = vmul.f32 %v433, %v464
        %v620 = vmul.f32 %v435, %v466
        %v621 = vadd.f32 %v619, %v620
        %v622 = vmul.f32 %v437, %v469
        %v623 = vadd.f32 %v621, %v622
        %v624 = vmul.f32 %v439, %v472
        %v625 = vadd.f32 %v623, %v624
        %v626 = vmul.f32 %v441, %v475
        %v627 = vadd.f32 %v625, %v626
        %v628 = vmul.f32 %v443, %v478
        %v629 = vadd.f32 %v627, %v628
        %v630 = vmul.f32 %v445, %v481
        %v631 = vadd.f32 %v629, %v630
        %v632 = vmul.f32 %v447, %v484
        %v633 = vadd.f32 %v631, %v632
        %v634 = vmul.f32 %v449, %v487
        %v635 = vadd.f32 %v633, %v634
        %v636 = vmul.f32 %v451, %v490
        %v637 = vadd.f32 %v635, %v636
        %v638 = vmul.f32 %v453, %v493
        %v639 = vadd.f32 %v637, %v638
        %v640 = vmul.f32 %v455, %v496
        %v641 = vadd.f32 %v639, %v640
        %v642 = vadd.f32 %v641, %v499
        %v643 = vmul.f32 %v433, %v501
        %v644 = vmul.f32 %v435, %v503
        %v645 = vadd.f32 %v643, %v644
        %v646 = vmul.f32 %v437, %v506
        %v647 = vadd.f32 %v645, %v646
        %v648 = vmul.f32 %v439, %v509
        %v649 = vadd.f32 %v647, %v648
        %v650 = vmul.f32 %v441, %v512
        %v651 = vadd.f32 %v649, %v650
        %v652 = vmul.f32 %v443, %v515
        %v653 = vadd.f32 %v651, %v652
        %v654 = vmul.f32 %v445, %v518
        %v655 = vadd.f32 %v653, %v654
        %v656 = vmul.f32 %v447, %v521
        %v657 = vadd.f32 %v655, %v656
        %v658 = vmul.f32 %v449, %v524
        %v659 = vadd.f32 %v657, %v658
        %v660 = vmul.f32 %v451, %v527
        %v661 = vadd.f32 %v659, %v660
        %v662 = vmul.f32 %v453, %v530
        %v663 = vadd.f32 %v661, %v662
        %v664 = vmul.f32 %v455, %v533
        %v665 = vadd.f32 %v663, %v664
        %v666 = vadd.f32 %v665, %v536
        %v667 = vmul.f32 %v433, %v538
        %v668 = vmul.f32 %v435, %v540
        %v669 = vadd.f32 %v667, %v668
        %v670 = vmul.f32 %v437, %v543
        %v671 = vadd.f32 %v669, %v670
        %v672 = vmul.f32 %v439, %v546
        %v673 = vadd.f32 %v671, %v672
        %v674 = vmul.f32 %v441, %v549
        %v675 = vadd.f32 %v673, %v674
        %v676 = vmul.f32 %v443, %v552
        %v677 = vadd.f32 %v675, %v676
        %v678 = vmul.f32 %v445, %v555
        %v679 = vadd.f32 %v677, %v678
        %v680 = vmul.f32 %v447, %v558
        %v681 = vadd.f32 %v679, %v680
        %v682 = vmul.f32 %v449, %v561
        %v683 = vadd.f32 %v681, %v682
        %v684 = vmul.f32 %v451, %v564
        %v685 = vadd.f32 %v683, %v684
        %v686 = vmul.f32 %v453, %v567
        %v687 = vadd.f32 %v685, %v686
        %v688 = vmul.f32 %v455, %v570
        %v689 = vadd.f32 %v687, %v688
        %v690 = vadd.f32 %v689, %v573
        %v691 = vmul.f32 %v433, %v575
        %v692 = vmul.f32 %v435, %v577
        %v693 = vadd.f32 %v691, %v692
        %v694 = vmul.f32 %v437, %v580
        %v695 = vadd.f32 %v693, %v694
        %v696 = vmul.f32 %v439, %v583
        %v697 = vadd.f32 %v695, %v696
        %v698 = vmul.f32 %v441, %v586
        %v699 = vadd.f32 %v697, %v698
        %v700 = vmul.f32 %v443, %v589
        %v701 = vadd.f32 %v699, %v700
        %v702 = vmul.f32 %v445, %v592
        %v703 = vadd.f32 %v701, %v702
        %v704 = vmul.f32 %v447, %v595
        %v705 = vadd.f32 %v703, %v704
        %v706 = vmul.f32 %v449, %v598
        %v707 = vadd.f32 %v705, %v706
        %v708 = vmul.f32 %v451, %v601
        %v709 = vadd.f32 %v707, %v708
        %v710 = vmul.f32 %v453, %v604
        %v711 = vadd.f32 %v709, %v710
        %v712 = vmul.f32 %v455, %v607
        %v713 = vadd.f32 %v711, %v712
        %v714 = vadd.f32 %v713, %v610
        %715 = vst [vmem:[%s356] sm:$0x3] %v642
        %s716 = scalar_lea.vmem %s356, 2
        %717 = vst [vmem:[%s716] sm:$0x3] %v666
        %s718 = scalar_lea.vmem %s356, 4
        %719 = vst [vmem:[%s718] sm:$0x3] %v690
        %s720 = scalar_lea.vmem %s356, 6
        %721 = vst [vmem:[%s720] sm:$0x3] %v714
        %v722 = vmul.f32 %v441, %v464
        %v723 = vmul.f32 %v443, %v466
        %v724 = vadd.f32 %v722, %v723
        %v725 = vmul.f32 %v445, %v469
        %v726 = vadd.f32 %v724, %v725
        %v727 = vmul.f32 %v447, %v472
        %v728 = vadd.f32 %v726, %v727
        %v729 = vmul.f32 %v449, %v475
        %v730 = vadd.f32 %v728, %v729
        %v731 = vmul.f32 %v451, %v478
        %v732 = vadd.f32 %v730, %v731
        %v733 = vmul.f32 %v453, %v481
        %v734 = vadd.f32 %v732, %v733
        %v735 = vmul.f32 %v455, %v484
        %v736 = vadd.f32 %v734, %v735
        %v737 = vmul.f32 %v457, %v487
        %v738 = vadd.f32 %v736, %v737
        %v739 = vmul.f32 %v459, %v490
        %v740 = vadd.f32 %v738, %v739
        %v741 = vmul.f32 %v461, %v493
        %v742 = vadd.f32 %v740, %v741
        %v743 = vmul.f32 %v463, %v496
        %v744 = vadd.f32 %v742, %v743
        %v745 = vadd.f32 %v744, %v499
        %v746 = vmul.f32 %v441, %v501
        %v747 = vmul.f32 %v443, %v503
        %v748 = vadd.f32 %v746, %v747
        %v749 = vmul.f32 %v445, %v506
        %v750 = vadd.f32 %v748, %v749
        %v751 = vmul.f32 %v447, %v509
        %v752 = vadd.f32 %v750, %v751
        %v753 = vmul.f32 %v449, %v512
        %v754 = vadd.f32 %v752, %v753
        %v755 = vmul.f32 %v451, %v515
        %v756 = vadd.f32 %v754, %v755
        %v757 = vmul.f32 %v453, %v518
        %v758 = vadd.f32 %v756, %v757
        %v759 = vmul.f32 %v455, %v521
        %v760 = vadd.f32 %v758, %v759
        %v761 = vmul.f32 %v457, %v524
        %v762 = vadd.f32 %v760, %v761
        %v763 = vmul.f32 %v459, %v527
        %v764 = vadd.f32 %v762, %v763
        %v765 = vmul.f32 %v461, %v530
        %v766 = vadd.f32 %v764, %v765
        %v767 = vmul.f32 %v463, %v533
        %v768 = vadd.f32 %v766, %v767
        %v769 = vadd.f32 %v768, %v536
        %v770 = vmul.f32 %v441, %v538
        %v771 = vmul.f32 %v443, %v540
        %v772 = vadd.f32 %v770, %v771
        %v773 = vmul.f32 %v445, %v543
        %v774 = vadd.f32 %v772, %v773
        %v775 = vmul.f32 %v447, %v546
        %v776 = vadd.f32 %v774, %v775
        %v777 = vmul.f32 %v449, %v549
        %v778 = vadd.f32 %v776, %v777
        %v779 = vmul.f32 %v451, %v552
        %v780 = vadd.f32 %v778, %v779
        %v781 = vmul.f32 %v453, %v555
        %v782 = vadd.f32 %v780, %v781
        %v783 = vmul.f32 %v455, %v558
        %v784 = vadd.f32 %v782, %v783
        %v785 = vmul.f32 %v457, %v561
        %v786 = vadd.f32 %v784, %v785
        %v787 = vmul.f32 %v459, %v564
        %v788 = vadd.f32 %v786, %v787
        %v789 = vmul.f32 %v461, %v567
        %v790 = vadd.f32 %v788, %v789
        %v791 = vmul.f32 %v463, %v570
        %v792 = vadd.f32 %v790, %v791
        %v793 = vadd.f32 %v792, %v573
        %v794 = vmul.f32 %v441, %v575
        %v795 = vmul.f32 %v443, %v577
        %v796 = vadd.f32 %v794, %v795
        %v797 = vmul.f32 %v445, %v580
        %v798 = vadd.f32 %v796, %v797
        %v799 = vmul.f32 %v447, %v583
        %v800 = vadd.f32 %v798, %v799
        %v801 = vmul.f32 %v449, %v586
        %v802 = vadd.f32 %v800, %v801
        %v803 = vmul.f32 %v451, %v589
        %v804 = vadd.f32 %v802, %v803
        %v805 = vmul.f32 %v453, %v592
        %v806 = vadd.f32 %v804, %v805
        %v807 = vmul.f32 %v455, %v595
        %v808 = vadd.f32 %v806, %v807
        %v809 = vmul.f32 %v457, %v598
        %v810 = vadd.f32 %v808, %v809
        %v811 = vmul.f32 %v459, %v601
        %v812 = vadd.f32 %v810, %v811
        %v813 = vmul.f32 %v461, %v604
        %v814 = vadd.f32 %v812, %v813
        %v815 = vmul.f32 %v463, %v607
        %v816 = vadd.f32 %v814, %v815
        %v817 = vadd.f32 %v816, %v610
        %818 = vst [vmem:[%s364] sm:$0x3] %v745
        %s819 = scalar_lea.vmem %s364, 2
        %820 = vst [vmem:[%s819] sm:$0x3] %v769
        %s821 = scalar_lea.vmem %s364, 4
        %822 = vst [vmem:[%s821] sm:$0x3] %v793
        %s823 = scalar_lea.vmem %s364, 6
        %824 = vst [vmem:[%s823] sm:$0x3] %v817
        %v825 = vmul.f32 %v500, %v464
        %v826 = vmul.f32 %v537, %v466
        %v827 = vadd.f32 %v825, %v826
        %v828 = vmul.f32 %v574, %v469
        %v829 = vadd.f32 %v827, %v828
        %v830 = vmul.f32 %v611, %v472
        %v831 = vadd.f32 %v829, %v830
        %v832 = vmul.f32 %v642, %v475
        %v833 = vadd.f32 %v831, %v832
        %v834 = vmul.f32 %v666, %v478
        %v835 = vadd.f32 %v833, %v834
        %v836 = vmul.f32 %v690, %v481
        %v837 = vadd.f32 %v835, %v836
        %v838 = vmul.f32 %v714, %v484
        %v839 = vadd.f32 %v837, %v838
        %v840 = vmul.f32 %v745, %v487
        %v841 = vadd.f32 %v839, %v840
        %v842 = vmul.f32 %v769, %v490
        %v843 = vadd.f32 %v841, %v842
        %v844 = vmul.f32 %v793, %v493
        %v845 = vadd.f32 %v843, %v844
        %v846 = vmul.f32 %v817, %v496
        %v847 = vadd.f32 %v845, %v846
        %v848 = vadd.f32 %v847, %v499
        %v849 = vmul.f32 %v500, %v501
        %v850 = vmul.f32 %v537, %v503
        %v851 = vadd.f32 %v849, %v850
        %v852 = vmul.f32 %v574, %v506
        %v853 = vadd.f32 %v851, %v852
        %v854 = vmul.f32 %v611, %v509
        %v855 = vadd.f32 %v853, %v854
        %v856 = vmul.f32 %v642, %v512
        %v857 = vadd.f32 %v855, %v856
        %v858 = vmul.f32 %v666, %v515
        %v859 = vadd.f32 %v857, %v858
        %v860 = vmul.f32 %v690, %v518
        %v861 = vadd.f32 %v859, %v860
        %v862 = vmul.f32 %v714, %v521
        %v863 = vadd.f32 %v861, %v862
        %v864 = vmul.f32 %v745, %v524
        %v865 = vadd.f32 %v863, %v864
        %v866 = vmul.f32 %v769, %v527
        %v867 = vadd.f32 %v865, %v866
        %v868 = vmul.f32 %v793, %v530
        %v869 = vadd.f32 %v867, %v868
        %v870 = vmul.f32 %v817, %v533
        %v871 = vadd.f32 %v869, %v870
        %v872 = vadd.f32 %v871, %v536
        %v873 = vmul.f32 %v500, %v538
        %v874 = vmul.f32 %v537, %v540
        %v875 = vadd.f32 %v873, %v874
        %v876 = vmul.f32 %v574, %v543
        %v877 = vadd.f32 %v875, %v876
        %v878 = vmul.f32 %v611, %v546
        %v879 = vadd.f32 %v877, %v878
        %v880 = vmul.f32 %v642, %v549
        %v881 = vadd.f32 %v879, %v880
        %v882 = vmul.f32 %v666, %v552
        %v883 = vadd.f32 %v881, %v882
        %v884 = vmul.f32 %v690, %v555
        %v885 = vadd.f32 %v883, %v884
        %v886 = vmul.f32 %v714, %v558
        %v887 = vadd.f32 %v885, %v886
        %v888 = vmul.f32 %v745, %v561
        %v889 = vadd.f32 %v887, %v888
        %v890 = vmul.f32 %v769, %v564
        %v891 = vadd.f32 %v889, %v890
        %v892 = vmul.f32 %v793, %v567
        %v893 = vadd.f32 %v891, %v892
        %v894 = vmul.f32 %v817, %v570
        %v895 = vadd.f32 %v893, %v894
        %v896 = vadd.f32 %v895, %v573
        %v897 = vmul.f32 %v500, %v575
        %v898 = vmul.f32 %v537, %v577
        %v899 = vadd.f32 %v897, %v898
        %v900 = vmul.f32 %v574, %v580
        %v901 = vadd.f32 %v899, %v900
        %v902 = vmul.f32 %v611, %v583
        %v903 = vadd.f32 %v901, %v902
        %v904 = vmul.f32 %v642, %v586
        %v905 = vadd.f32 %v903, %v904
        %v906 = vmul.f32 %v666, %v589
        %v907 = vadd.f32 %v905, %v906
        %v908 = vmul.f32 %v690, %v592
        %v909 = vadd.f32 %v907, %v908
        %v910 = vmul.f32 %v714, %v595
        %v911 = vadd.f32 %v909, %v910
        %v912 = vmul.f32 %v745, %v598
        %v913 = vadd.f32 %v911, %v912
        %v914 = vmul.f32 %v769, %v601
        %v915 = vadd.f32 %v913, %v914
        %v916 = vmul.f32 %v793, %v604
        %v917 = vadd.f32 %v915, %v916
        %v918 = vmul.f32 %v817, %v607
        %v919 = vadd.f32 %v917, %v918
        %v920 = vadd.f32 %v919, %v610
        %921 = vst [vmem:[%s372] sm:$0x3] %v848
        %s922 = scalar_lea.vmem %s372, 2
        %923 = vst [vmem:[%s922] sm:$0x3] %v872
        %s924 = scalar_lea.vmem %s372, 4
        %925 = vst [vmem:[%s924] sm:$0x3] %v896
        %s926 = scalar_lea.vmem %s372, 6
        %927 = vst [vmem:[%s926] sm:$0x3] %v920
        %p928 = scmp.lt.s32.totalorder %s24, 1
        %s929 = scalar_select %p928, %s24, 1
        %p930 = scmp.lt.s32.totalorder %s25, 0
        %s931 = scalar_select %p930, %s25, 0
        %s932 = smul.addr %s929, 4
        %s933 = sadd.s32 %s931, %s932
        %s934 = smul.addr %s933, 2
        %s935 = scalar_lea.vmem %s3, %s934
        %p936 = scmp.lt.s32.totalorder %s24, 1
        %s937 = scalar_select %p936, %s24, 1
        %p938 = scmp.lt.s32.totalorder %s25, 0
        %s939 = scalar_select %p938, %s25, 0
        %s940 = smul.addr %s937, 4
        %s941 = sadd.s32 %s939, %s940
        %s942 = smul.addr %s941, 2
        %s943 = scalar_lea.vmem %s4, %s942
        %p944 = scmp.lt.s32.totalorder %s24, 1
        %s945 = scalar_select %p944, %s24, 1
        %p946 = scmp.lt.s32.totalorder %s25, 0
        %s947 = scalar_select %p946, %s25, 0
        %s948 = smul.addr %s945, 4
        %s949 = sadd.s32 %s947, %s948
        %s950 = smul.addr %s949, 2
        %s951 = scalar_lea.vmem %s5, %s950
        %p952 = scmp.lt.s32.totalorder %s24, 1
        %s953 = scalar_select %p952, %s24, 1
        %p954 = scmp.lt.s32.totalorder %s25, 0
        %s955 = scalar_select %p954, %s25, 0
        %s956 = smul.addr %s953, 4
        %s957 = sadd.s32 %s955, %s956
        %s958 = smul.addr %s957, 2
        %s959 = scalar_lea.vmem %s6, %s958
        // Predicated region
        $region41: #{_lambda_.1} parent=31 // pred_check
          %p960 = pneg %p122
        $region42: #{_lambda_.1} parent=31 // pred_check_branch
          %962 = sbr.rel (%p960) target = $region44
        $region43: #{_lambda_.1} parent=31 // pred_region
          _
        $region44: #{_lambda_.1} parent=31 // pred_fallthru
          _
        // Predicated region
        $region45: #{_lambda_.1} parent=31 // pred_check
          %p963 = pneg %p150
        $region46: #{_lambda_.1} parent=31 // pred_check_branch
          %965 = sbr.rel (%p963) target = $region48
        $region47: #{_lambda_.1} parent=31 // pred_region
          _
        $region48: #{_lambda_.1} parent=31 // pred_fallthru
          _
        // Predicated region
        $region49: #{_lambda_.1} parent=31 // pred_check
          %p966 = pneg %p178
        $region50: #{_lambda_.1} parent=31 // pred_check_branch
          %968 = sbr.rel (%p966) target = $region52
        $region51: #{_lambda_.1} parent=31 // pred_region
          _
        $region52: #{_lambda_.1} parent=31 // pred_fallthru
          _
        // Predicated region
        $region53: #{_lambda_.1} parent=31 // pred_check
          %p969 = pneg %p206
        $region54: #{_lambda_.1} parent=31 // pred_check_branch
          %971 = sbr.rel (%p969) target = $region56
        $region55: #{_lambda_.1} parent=31 // pred_region
          _
        $region56: #{_lambda_.1} parent=31 // pred_fallthru
          _
      $region32: #{_lambda_.1} parent=5 // pred_fallthru
        _
      %p972 = scmp.le.s32.totalorder 2, %s15
      // Predicated region
      $region57: #{_lambda_.1} parent=5 // pred_check
        %p973 = pneg %p972
      $region58: #{_lambda_.1} parent=5 // pred_check_branch
        %975 = sbr.rel (%p973) target = $region60
      $region59: #{_lambda_.1} parent=5 // pred_region
        %s976 = ssub.s32 %s15, 2
        // Predicated region
        $region61: #{_lambda_.1} parent=59 // pred_check
          %p977 = pneg %p128
        $region62: #{_lambda_.1} parent=59 // pred_check_branch
          %979 = sbr.rel (%p977) target = $region64
        $region63: #{_lambda_.1} parent=59 // pred_region
          %p980 = scmp.lt.s32.totalorder %s26, 1
          %s981 = scalar_select %p980, %s26, 1
          %p982 = scmp.lt.s32.totalorder %s27, 0
          %s983 = scalar_select %p982, %s27, 0
          %s984 = smul.addr %s981, 4
          %s985 = sadd.s32 %s983, %s984
          %s986 = smul.addr %s985, 2
          %s987 = scalar_lea.vmem %s3, %s986
        $region64: #{_lambda_.1} parent=59 // pred_fallthru
          _
        // Predicated region
        $region65: #{_lambda_.1} parent=59 // pred_check
          %p988 = pneg %p156
        $region66: #{_lambda_.1} parent=59 // pred_check_branch
          %990 = sbr.rel (%p988) target = $region68
        $region67: #{_lambda_.1} parent=59 // pred_region
          %p991 = scmp.lt.s32.totalorder %s26, 1
          %s992 = scalar_select %p991, %s26, 1
          %p993 = scmp.lt.s32.totalorder %s27, 0
          %s994 = scalar_select %p993, %s27, 0
          %s995 = smul.addr %s992, 4
          %s996 = sadd.s32 %s994, %s995
          %s997 = smul.addr %s996, 2
          %s998 = scalar_lea.vmem %s4, %s997
        $region68: #{_lambda_.1} parent=59 // pred_fallthru
          _
        // Predicated region
        $region69: #{_lambda_.1} parent=59 // pred_check
          %p999 = pneg %p184
        $region70: #{_lambda_.1} parent=59 // pred_check_branch
          %1001 = sbr.rel (%p999) target = $region72
        $region71: #{_lambda_.1} parent=59 // pred_region
          %p1002 = scmp.lt.s32.totalorder %s26, 1
          %s1003 = scalar_select %p1002, %s26, 1
          %p1004 = scmp.lt.s32.totalorder %s27, 0
          %s1005 = scalar_select %p1004, %s27, 0
          %s1006 = smul.addr %s1003, 4
          %s1007 = sadd.s32 %s1005, %s1006
          %s1008 = smul.addr %s1007, 2
          %s1009 = scalar_lea.vmem %s5, %s1008
        $region72: #{_lambda_.1} parent=59 // pred_fallthru
          _
        // Predicated region
        $region73: #{_lambda_.1} parent=59 // pred_check
          %p1010 = pneg %p212
        $region74: #{_lambda_.1} parent=59 // pred_check_branch
          %1012 = sbr.rel (%p1010) target = $region76
        $region75: #{_lambda_.1} parent=59 // pred_region
          %p1013 = scmp.lt.s32.totalorder %s26, 1
          %s1014 = scalar_select %p1013, %s26, 1
          %p1015 = scmp.lt.s32.totalorder %s27, 0
          %s1016 = scalar_select %p1015, %s27, 0
          %s1017 = smul.addr %s1014, 4
          %s1018 = sadd.s32 %s1016, %s1017
          %s1019 = smul.addr %s1018, 2
          %s1020 = scalar_lea.vmem %s6, %s1019
        $region76: #{_lambda_.1} parent=59 // pred_fallthru
          _
      $region60: #{_lambda_.1} parent=5 // pred_fallthru
        _
    $region6: #{_lambda_.1} parent=1 // loop_footer
      %s19 = sadd.s32 1, %s15
    $region7: #{_lambda_.1} parent=1 // loop_footer_branch
      %14 = sbr.rel target = $region3
    $region8: #{_lambda_.1} parent=1 // loop_exit
      _
    %1021 = vsyncpa [#allocation3], 1
    %s1022 = scalar_lea.sflag [#allocation3], 1
    %1023 = vsyncpa %s1022, 1
    %1024 = vsyncpa [#allocation5], 1

</llo_original>
